<compile_context>
chip_gen: v7x
topology: tpu7x:2x2x1
jax: 0.10.0
libtpu: 0.0.40
codegen_flags: <defaults>
</compile_context>

<pallas_src>
import functools

import jax
import jax.numpy as jnp
from jax.experimental import pallas as pl
from jax.experimental.pallas import tpu as pltpu


# ----------------------------------------------------------------------------
# Pallas kernel: one (batch, query-tile) per grid step.
# ----------------------------------------------------------------------------
def _attn_prop_kernel(x_ref, src_ref,
                      wq_ref, bq_ref, wkv_ref, bkv_ref,
                      wm_ref, bm_ref,
                      w1x_ref, w1m_ref, b1_ref,
                      w2_ref, b2_ref,
                      out_ref,
                      k_sc, v_sc,
                      *, num_heads, head_dim):
    f32 = jnp.float32
    bf16 = jnp.bfloat16
    D = x_ref.shape[-1]

    # K/V projections are shared by every query tile of the same batch element.
    # The query-tile axis is the innermost grid axis (marked "arbitrary"), so
    # program_id(1) == 0 exactly once per batch element: compute K/V there and
    # keep them in VMEM scratch for the remaining query tiles.
    @pl.when(pl.program_id(1) == 0)
    def _():
        src = src_ref[0]                                                # (M, D) bf16
        kv = jnp.dot(src, wkv_ref[...], preferred_element_type=f32) + bkv_ref[...]
        k_sc[...] = kv[:, :D].astype(bf16)
        v_sc[...] = kv[:, D:].astype(bf16)

    x = x_ref[0]        # (TN, D)  bf16, channels-last query tile

    # Q projection: single (TN, D) @ (D, D) MXU matmul.  The 1/sqrt(head_dim)
    # softmax scale is folded into wq/bq by the wrapper and the PyTorch head
    # interleave (channel c = d*H + h) is permuted so head h occupies the
    # contiguous column block [h*hd, (h+1)*hd).
    q = (jnp.dot(x, wq_ref[...], preferred_element_type=f32) + bq_ref[...]).astype(bf16)
    k = k_sc[...]       # (M, D) bf16
    v = v_sc[...]       # (M, D) bf16

    # Per-head scaled-dot attention with deferred softmax normalization.
    o_heads = []
    for h in range(num_heads):                      # static loop, H is small
        lo = h * head_dim
        qh = q[:, lo:lo + head_dim]                 # (TN, hd)
        kh = k[:, lo:lo + head_dim]                 # (M,  hd)
        vh = v[:, lo:lo + head_dim]                 # (M,  hd)
        s = jax.lax.dot_general(qh, kh, (((1,), (1,)), ((), ())),
                                preferred_element_type=f32)            # (TN, M)
        s = s - jnp.max(s, axis=-1, keepdims=True)
        p = jnp.exp(s)                                                  # unnormalized
        denom = jnp.sum(p, axis=-1, keepdims=True)                      # (TN, 1)
        o_un = jnp.dot(p.astype(bf16), vh, preferred_element_type=f32)  # (TN, hd)
        o_heads.append(o_un * pl.reciprocal(denom, approx=True))
    # TODO(synk): if M grows past ~2K on v7x, stream K/V over M flash-style to bound
    #             the (TN, M) score temporaries further (TN tiling already caps them).
    o_all = jnp.concatenate(o_heads, axis=-1).astype(bf16)              # (TN, D)

    # merge Conv1d as one full-width matmul (input channels pre-permuted in wrapper).
    msg = jnp.dot(o_all, wm_ref[...], preferred_element_type=f32) + bm_ref[...]   # (TN, D) f32

    # MLP([2D, 2D, D]) on concat([x, msg]): the concat is folded into the first
    # Conv1d by splitting its input channels into an x-part and a msg-part; the
    # eval-mode BatchNorm affine is folded into w1/b1 by the wrapper.
    h1 = (jnp.dot(x, w1x_ref[...], preferred_element_type=f32)
          + jnp.dot(msg.astype(bf16), w1m_ref[...], preferred_element_type=f32)
          + b1_ref[...])                                                # (TN, 2D)
    h1 = jnp.maximum(h1, 0.0).astype(bf16)                              # ReLU
    out = jnp.dot(h1, w2_ref[...], preferred_element_type=f32) + b2_ref[...]      # (TN, D)
    out_ref[0] = out.astype(out_ref.dtype)


# ----------------------------------------------------------------------------
# Wrapper: parameter re-layout / folding + pallas_call.
# ----------------------------------------------------------------------------
def _choose_block_n(n, target=256):
    if n <= target:
        return n
    for cand in range(target, 7, -1):
        if n % cand == 0 and cand % 8 == 0:
            return cand
    return n


def attentional_propagation(x, source, params, num_heads, block_n=None):
    """x: (B, D, N), source: (B, D, M)  (PyTorch NCW).  Returns (B, D, N)."""
    B, D, N = x.shape
    M = source.shape[2]
    H = num_heads
    hd = D // H
    eps = 1e-5
    f32 = jnp.float32
    bf16 = jnp.bfloat16

    # Head permutation: PyTorch view(B, hd, H, N) maps channel c -> (d, h) with
    # c = d*H + h.  perm[h*hd + d] = d*H + h makes head h's dims contiguous.
    perm = (jnp.arange(hd)[None, :] * H + jnp.arange(H)[:, None]).reshape(-1)

    inv_sqrt_hd = 1.0 / (hd ** 0.5)

    def proj_split(w, b, scale=1.0):
        wt = (w[perm, :] * scale).T.astype(bf16)            # (D_in, D), head-contiguous cols
        bt = (b[perm] * scale).reshape(1, D).astype(f32)
        return wt, bt

    wq_t, bq_t = proj_split(params['wq'], params['bq'], inv_sqrt_hd)   # softmax scale folded
    wk_t, bk_t = proj_split(params['wk'], params['bk'])
    wv_t, bv_t = proj_split(params['wv'], params['bv'])
    # fused K/V projection: one (D, 2D) matmul inside the kernel.
    wkv_t = jnp.concatenate([wk_t, wv_t], axis=1)            # (D, 2D)
    bkv_t = jnp.concatenate([bk_t, bv_t], axis=1)            # (1, 2D)

    # merge Conv1d: permute its *input* channels to match head-contiguous stacking.
    wm_t = params['wm'][:, perm].T.astype(bf16)              # (D, D)
    bm_t = params['bm'].reshape(1, D).astype(f32)

    # MLP layer 1 with eval-mode BatchNorm folded into the weights/bias.
    bn_scale = params['gamma'] / jnp.sqrt(params['rvar'] + eps)         # (2D,)
    bn_shift = params['beta'] - params['rmean'] * bn_scale
    w1 = params['w1']                                                   # (2D, 2D)
    w1x_t = (w1[:, :D].T * bn_scale[None, :]).astype(bf16)              # (D, 2D)
    w1m_t = (w1[:, D:].T * bn_scale[None, :]).astype(bf16)              # (D, 2D)
    b1_t = (params['b1'] * bn_scale + bn_shift).reshape(1, 2 * D).astype(f32)

    w2_t = params['w2'].T.astype(bf16)                                  # (2D, D)
    b2_t = params['b2'].reshape(1, D).astype(f32)

    # channels-last activations (feature dim on the 128-lane axis), bf16 MXU inputs.
    # TODO(synk): in a full SuperGlue port keep activations channels-last across layers
    #             so these transposes (extra HBM passes) disappear.
    x_t = x.transpose(0, 2, 1).astype(bf16)                 # (B, N, D)
    src_t = source.transpose(0, 2, 1).astype(bf16)          # (B, M, D)

    tn = _choose_block_n(N) if block_n is None else block_n
    assert N % tn == 0, (N, tn)
    grid = (B, N // tn)

    kernel = functools.partial(_attn_prop_kernel, num_heads=H, head_dim=hd)

    def wspec(shape):
        return pl.BlockSpec(shape, lambda b, i: (0,) * len(shape))

    out_t = pl.pallas_call(
        kernel,
        out_shape=jax.ShapeDtypeStruct((B, N, D), x.dtype),
        grid=grid,
        in_specs=[
            pl.BlockSpec((1, tn, D), lambda b, i: (b, i, 0)),     # x query tile
            pl.BlockSpec((1, M, D), lambda b, i: (b, 0, 0)),      # source (all keys/values)
            wspec((D, D)), wspec((1, D)),                         # wq, bq (scale folded)
            wspec((D, 2 * D)), wspec((1, 2 * D)),                 # wkv, bkv (fused K/V proj)
            wspec((D, D)), wspec((1, D)),                         # wm, bm
            wspec((D, 2 * D)), wspec((D, 2 * D)), wspec((1, 2 * D)),   # w1x, w1m, b1 (BN folded)
            wspec((2 * D, D)), wspec((1, D)),                     # w2, b2
        ],
        out_specs=pl.BlockSpec((1, tn, D), lambda b, i: (b, i, 0)),
        scratch_shapes=[
            pltpu.VMEM((M, D), bf16),     # K cache (per batch element)
            pltpu.VMEM((M, D), bf16),     # V cache (per batch element)
        ],
        compiler_params=pltpu.CompilerParams(
            # query-tile axis carries the K/V scratch -> must stay sequential.
            dimension_semantics=("parallel", "arbitrary"),
            vmem_limit_bytes=48 * 1024 * 1024,
        ),
    )(x_t, src_t, wq_t, bq_t, wkv_t, bkv_t, wm_t, bm_t,
      w1x_t, w1m_t, b1_t, w2_t, b2_t)

    return out_t.transpose(0, 2, 1)                          # back to (B, D, N)


# ----------------------------------------------------------------------------
# Pure-JAX reference mirroring the PyTorch module literally (f32, for checking).
# ----------------------------------------------------------------------------
def _reference(x, source, params, num_heads):
    eps = 1e-5

    def conv1d(inp, w, b):   # Conv1d(kernel_size=1): (B, Cin, N) -> (B, Cout, N)
        return jnp.einsum('oc,bcn->bon', w, inp) + b[None, :, None]

    B, D, N = x.shape
    hd = D // num_heads
    q = conv1d(x, params['wq'], params['bq']).reshape(B, hd, num_heads, N)
    k = conv1d(source, params['wk'], params['bk']).reshape(B, hd, num_heads, -1)
    v = conv1d(source, params['wv'], params['bv']).reshape(B, hd, num_heads, -1)
    scores = jnp.einsum('bdhn,bdhm->bhnm', q, k) / hd ** 0.5
    prob = jax.nn.softmax(scores, axis=3)
    msg = jnp.einsum('bhnm,bdhm->bdhn', prob, v).reshape(B, D, -1)
    msg = conv1d(msg, params['wm'], params['bm'])
    cat = jnp.concatenate([x, msg], axis=1)
    h1 = conv1d(cat, params['w1'], params['b1'])
    h1 = ((h1 - params['rmean'][None, :, None])
          / jnp.sqrt(params['rvar'][None, :, None] + eps)
          * params['gamma'][None, :, None] + params['beta'][None, :, None])
    h1 = jnp.maximum(h1, 0.0)
    return conv1d(h1, params['w2'], params['b2'])


if __name__ == "__main__":
    B, D, H = 2, 32, 4            # feature_dim=32, num_heads=4 -> head_dim=8
    N, M = 16, 16                 # number of keypoints in x / source
    key = jax.random.PRNGKey(0)
    ks = jax.random.split(key, 16)

    def rn(k, shape, scale=0.1):
        return (scale * jax.random.normal(k, shape)).astype(jnp.float32)

    # Deterministic synthetic parameters (Conv1d kernel_size=1 weights stored as (out, in)).
    params = {
        'wq': rn(ks[0], (D, D)), 'bq': rn(ks[1], (D,)),
        'wk': rn(ks[2], (D, D)), 'bk': rn(ks[3], (D,)),
        'wv': rn(ks[4], (D, D)), 'bv': rn(ks[5], (D,)),
        'wm': rn(ks[6], (D, D)), 'bm': rn(ks[7], (D,)),
        'w1': rn(ks[8], (2 * D, 2 * D)), 'b1': rn(ks[9], (2 * D,)),
        'gamma': jnp.ones((2 * D,), jnp.float32),   # BatchNorm defaults
        'beta': jnp.zeros((2 * D,), jnp.float32),
        'rmean': jnp.zeros((2 * D,), jnp.float32),
        'rvar': jnp.ones((2 * D,), jnp.float32),
        'w2': rn(ks[10], (D, 2 * D)),
        'b2': jnp.zeros((D,), jnp.float32),         # nn.init.constant_(mlp[-1].bias, 0.0)
    }

    x = rn(ks[11], (B, D, N), 1.0)
    source = rn(ks[12], (B, D, M), 1.0)

    out = jax.block_until_ready(attentional_propagation(x, source, params, H))
    ref = jax.block_until_ready(_reference(x, source, params, H))

    assert out.shape == (B, D, N), out.shape
    # bf16 matmul inputs (f32 accumulation) -> looser tolerance vs. the f32 reference.
    err = float(jnp.max(jnp.abs(out - ref)))
    assert jnp.allclose(out, ref, atol=5e-2, rtol=5e-2), err
    print("KERNEL_OK")
</pallas_src>

<mosaic_0001>
module attributes {stable_mosaic.version = 11 : i64} {
  func.func @_attn_prop_kernel(%arg0: i32, %arg1: i32, %arg2: memref<1x16x32xbf16, #tpu.memory_space<vmem>>, %arg3: memref<1x16x32xbf16, #tpu.memory_space<vmem>>, %arg4: memref<32x32xbf16, #tpu.memory_space<vmem>>, %arg5: memref<1x32xf32, #tpu.memory_space<vmem>>, %arg6: memref<32x64xbf16, #tpu.memory_space<vmem>>, %arg7: memref<1x64xf32, #tpu.memory_space<vmem>>, %arg8: memref<32x32xbf16, #tpu.memory_space<vmem>>, %arg9: memref<1x32xf32, #tpu.memory_space<vmem>>, %arg10: memref<32x64xbf16, #tpu.memory_space<vmem>>, %arg11: memref<32x64xbf16, #tpu.memory_space<vmem>>, %arg12: memref<1x64xf32, #tpu.memory_space<vmem>>, %arg13: memref<64x32xbf16, #tpu.memory_space<vmem>>, %arg14: memref<1x32xf32, #tpu.memory_space<vmem>>, %arg15: memref<1x16x32xf32, #tpu.memory_space<vmem>>, %arg16: memref<16x32xbf16, #tpu.memory_space<vmem>>, %arg17: memref<16x32xbf16, #tpu.memory_space<vmem>>) attributes {dimension_semantics = [#tpu.dimension_semantics<parallel>, #tpu.dimension_semantics<arbitrary>], iteration_bounds = array<i64: 2, 1>, scalar_prefetch = 0 : i64, scratch_operands = 2 : i64, tpu.core_type = #tpu.core_type<tc>, window_params = [{transform_indices = @transform_0, window_bounds = array<i64: 1, 16, 32>}, {transform_indices = @transform_1, window_bounds = array<i64: 1, 16, 32>}, {pipeline_mode = #tpu.pipeline_mode<synchronous>, transform_indices = @transform_2, window_bounds = array<i64: 32, 32>}, {pipeline_mode = #tpu.pipeline_mode<synchronous>, transform_indices = @transform_3, window_bounds = array<i64: 1, 32>}, {pipeline_mode = #tpu.pipeline_mode<synchronous>, transform_indices = @transform_4, window_bounds = array<i64: 32, 64>}, {pipeline_mode = #tpu.pipeline_mode<synchronous>, transform_indices = @transform_5, window_bounds = array<i64: 1, 64>}, {pipeline_mode = #tpu.pipeline_mode<synchronous>, transform_indices = @transform_6, window_bounds = array<i64: 32, 32>}, {pipeline_mode = #tpu.pipeline_mode<synchronous>, transform_indices = @transform_7, window_bounds = array<i64: 1, 32>}, {pipeline_mode = #tpu.pipeline_mode<synchronous>, transform_indices = @transform_8, window_bounds = array<i64: 32, 64>}, {pipeline_mode = #tpu.pipeline_mode<synchronous>, transform_indices = @transform_9, window_bounds = array<i64: 32, 64>}, {pipeline_mode = #tpu.pipeline_mode<synchronous>, transform_indices = @transform_10, window_bounds = array<i64: 1, 64>}, {pipeline_mode = #tpu.pipeline_mode<synchronous>, transform_indices = @transform_11, window_bounds = array<i64: 64, 32>}, {pipeline_mode = #tpu.pipeline_mode<synchronous>, transform_indices = @transform_12, window_bounds = array<i64: 1, 32>}, {transform_indices = @transform_13, window_bounds = array<i64: 1, 16, 32>}]} {
    %c0_i32 = arith.constant 0 : i32
    %0 = arith.cmpi eq, %arg1, %c0_i32 : i32
    %1 = arith.extui %0 : i1 to i32
    %c0_i32_0 = arith.constant 0 : i32
    %2 = arith.cmpi ne, %1, %c0_i32_0 : i32
    scf.if %2 {
      %c0_49 = arith.constant 0 : index
      %c0_50 = arith.constant 0 : index
      %c0_51 = arith.constant 0 : index
      %104 = vector.load %arg3[%c0_49, %c0_50, %c0_51] : memref<1x16x32xbf16, #tpu.memory_space<vmem>>, vector<1x16x32xbf16>
      %105 = vector.shape_cast %104 : vector<1x16x32xbf16> to vector<16x32xbf16>
      %c0_52 = arith.constant 0 : index
      %c0_53 = arith.constant 0 : index
      %106 = vector.load %arg6[%c0_52, %c0_53] : memref<32x64xbf16, #tpu.memory_space<vmem>>, vector<32x64xbf16>
      %cst_54 = arith.constant dense<0.000000e+00> : vector<16x64xf32>
      %107 = tpu.matmul %105, %106, %cst_54 {dimension_numbers = #tpu.dot_dimension_numbers<[1], [0], [0], [1], [0, 0, 1, 1], [], []>} : vector<16x32xbf16>, vector<32x64xbf16>, vector<16x64xf32> -> vector<16x64xf32>
      %c0_55 = arith.constant 0 : index
      %c0_56 = arith.constant 0 : index
      %108 = vector.load %arg7[%c0_55, %c0_56] : memref<1x64xf32, #tpu.memory_space<vmem>>, vector<1x64xf32>
      %109 = vector.broadcast %108 : vector<1x64xf32> to vector<16x64xf32>
      %110 = arith.addf %107, %109 : vector<16x64xf32>
      %111 = vector.extract_strided_slice %110 {offsets = [0, 0], sizes = [16, 32], strides = [1, 1]} : vector<16x64xf32> to vector<16x32xf32>
      %112 = arith.truncf %111 : vector<16x32xf32> to vector<16x32xbf16>
      %c0_57 = arith.constant 0 : index
      %c0_58 = arith.constant 0 : index
      %113 = vector.load %arg16[%c0_57, %c0_58] : memref<16x32xbf16, #tpu.memory_space<vmem>>, vector<16x32xbf16>
      tpu.vector_store %arg16[%c0_57, %c0_58], %112 {strides = array<i32>} : memref<16x32xbf16, #tpu.memory_space<vmem>>, vector<16x32xbf16>,
      %114 = vector.extract_strided_slice %110 {offsets = [0, 32], sizes = [16, 32], strides = [1, 1]} : vector<16x64xf32> to vector<16x32xf32>
      %115 = arith.truncf %114 : vector<16x32xf32> to vector<16x32xbf16>
      %c0_59 = arith.constant 0 : index
      %c0_60 = arith.constant 0 : index
      %116 = vector.load %arg17[%c0_59, %c0_60] : memref<16x32xbf16, #tpu.memory_space<vmem>>, vector<16x32xbf16>
      tpu.vector_store %arg17[%c0_59, %c0_60], %115 {strides = array<i32>} : memref<16x32xbf16, #tpu.memory_space<vmem>>, vector<16x32xbf16>,
    } else {
    }
    %c0 = arith.constant 0 : index
    %c0_1 = arith.constant 0 : index
    %c0_2 = arith.constant 0 : index
    %3 = vector.load %arg2[%c0, %c0_1, %c0_2] : memref<1x16x32xbf16, #tpu.memory_space<vmem>>, vector<1x16x32xbf16>
    %4 = vector.shape_cast %3 : vector<1x16x32xbf16> to vector<16x32xbf16>
    %c0_3 = arith.constant 0 : index
    %c0_4 = arith.constant 0 : index
    %5 = vector.load %arg4[%c0_3, %c0_4] : memref<32x32xbf16, #tpu.memory_space<vmem>>, vector<32x32xbf16>
    %cst = arith.constant dense<0.000000e+00> : vector<16x32xf32>
    %6 = tpu.matmul %4, %5, %cst {dimension_numbers = #tpu.dot_dimension_numbers<[1], [0], [0], [1], [0, 0, 1, 1], [], []>} : vector<16x32xbf16>, vector<32x32xbf16>, vector<16x32xf32> -> vector<16x32xf32>
    %c0_5 = arith.constant 0 : index
    %c0_6 = arith.constant 0 : index
    %7 = vector.load %arg5[%c0_5, %c0_6] : memref<1x32xf32, #tpu.memory_space<vmem>>, vector<1x32xf32>
    %8 = vector.broadcast %7 : vector<1x32xf32> to vector<16x32xf32>
    %9 = arith.addf %6, %8 : vector<16x32xf32>
    %10 = arith.truncf %9 : vector<16x32xf32> to vector<16x32xbf16>
    %c0_7 = arith.constant 0 : index
    %c0_8 = arith.constant 0 : index
    %11 = vector.load %arg16[%c0_7, %c0_8] : memref<16x32xbf16, #tpu.memory_space<vmem>>, vector<16x32xbf16>
    %c0_9 = arith.constant 0 : index
    %c0_10 = arith.constant 0 : index
    %12 = vector.load %arg17[%c0_9, %c0_10] : memref<16x32xbf16, #tpu.memory_space<vmem>>, vector<16x32xbf16>
    %13 = vector.extract_strided_slice %10 {offsets = [0, 0], sizes = [16, 8], strides = [1, 1]} : vector<16x32xbf16> to vector<16x8xbf16>
    %14 = vector.extract_strided_slice %11 {offsets = [0, 0], sizes = [16, 8], strides = [1, 1]} : vector<16x32xbf16> to vector<16x8xbf16>
    %15 = vector.extract_strided_slice %12 {offsets = [0, 0], sizes = [16, 8], strides = [1, 1]} : vector<16x32xbf16> to vector<16x8xbf16>
    %cst_11 = arith.constant dense<0.000000e+00> : vector<16x16xf32>
    %16 = tpu.matmul %13, %14, %cst_11 {dimension_numbers = #tpu.dot_dimension_numbers<[1], [1], [0], [0], [0, 0, 1, 0], [], []>} : vector<16x8xbf16>, vector<16x8xbf16>, vector<16x16xf32> -> vector<16x16xf32>
    %cst_12 = arith.constant dense<0xFF800000> : vector<16xf32>
    %17 = vector.multi_reduction <maximumf>, %16, %cst_12 [1] : vector<16x16xf32> to vector<16xf32>
    %18 = vector.shape_cast %17 : vector<16xf32> to vector<16x1xf32>
    %19 = vector.broadcast %18 : vector<16x1xf32> to vector<16x16xf32>
    %20 = arith.subf %16, %19 : vector<16x16xf32>
    %21 = math.exp %20 : vector<16x16xf32>
    %cst_13 = arith.constant dense<0.000000e+00> : vector<16xf32>
    %22 = vector.multi_reduction <add>, %21, %cst_13 [1] : vector<16x16xf32> to vector<16xf32>
    %23 = vector.shape_cast %22 : vector<16xf32> to vector<16x1xf32>
    %24 = arith.truncf %21 : vector<16x16xf32> to vector<16x16xbf16>
    %cst_14 = arith.constant dense<0.000000e+00> : vector<16x8xf32>
    %25 = tpu.matmul %24, %15, %cst_14 {dimension_numbers = #tpu.dot_dimension_numbers<[1], [0], [0], [1], [0, 0, 1, 1], [], []>} : vector<16x16xbf16>, vector<16x8xbf16>, vector<16x8xf32> -> vector<16x8xf32>
    %26 = tpu.reciprocal %23 {approx = true} : vector<16x1xf32> -> vector<16x1xf32>
    %27 = vector.broadcast %26 : vector<16x1xf32> to vector<16x8xf32>
    %28 = arith.mulf %25, %27 : vector<16x8xf32>
    %29 = vector.extract_strided_slice %10 {offsets = [0, 8], sizes = [16, 8], strides = [1, 1]} : vector<16x32xbf16> to vector<16x8xbf16>
    %30 = vector.extract_strided_slice %11 {offsets = [0, 8], sizes = [16, 8], strides = [1, 1]} : vector<16x32xbf16> to vector<16x8xbf16>
    %31 = vector.extract_strided_slice %12 {offsets = [0, 8], sizes = [16, 8], strides = [1, 1]} : vector<16x32xbf16> to vector<16x8xbf16>
    %cst_15 = arith.constant dense<0.000000e+00> : vector<16x16xf32>
    %32 = tpu.matmul %29, %30, %cst_15 {dimension_numbers = #tpu.dot_dimension_numbers<[1], [1], [0], [0], [0, 0, 1, 0], [], []>} : vector<16x8xbf16>, vector<16x8xbf16>, vector<16x16xf32> -> vector<16x16xf32>
    %cst_16 = arith.constant dense<0xFF800000> : vector<16xf32>
    %33 = vector.multi_reduction <maximumf>, %32, %cst_16 [1] : vector<16x16xf32> to vector<16xf32>
    %34 = vector.shape_cast %33 : vector<16xf32> to vector<16x1xf32>
    %35 = vector.broadcast %34 : vector<16x1xf32> to vector<16x16xf32>
    %36 = arith.subf %32, %35 : vector<16x16xf32>
    %37 = math.exp %36 : vector<16x16xf32>
    %cst_17 = arith.constant dense<0.000000e+00> : vector<16xf32>
    %38 = vector.multi_reduction <add>, %37, %cst_17 [1] : vector<16x16xf32> to vector<16xf32>
    %39 = vector.shape_cast %38 : vector<16xf32> to vector<16x1xf32>
    %40 = arith.truncf %37 : vector<16x16xf32> to vector<16x16xbf16>
    %cst_18 = arith.constant dense<0.000000e+00> : vector<16x8xf32>
    %41 = tpu.matmul %40, %31, %cst_18 {dimension_numbers = #tpu.dot_dimension_numbers<[1], [0], [0], [1], [0, 0, 1, 1], [], []>} : vector<16x16xbf16>, vector<16x8xbf16>, vector<16x8xf32> -> vector<16x8xf32>
    %42 = tpu.reciprocal %39 {approx = true} : vector<16x1xf32> -> vector<16x1xf32>
    %43 = vector.broadcast %42 : vector<16x1xf32> to vector<16x8xf32>
    %44 = arith.mulf %41, %43 : vector<16x8xf32>
    %45 = vector.extract_strided_slice %10 {offsets = [0, 16], sizes = [16, 8], strides = [1, 1]} : vector<16x32xbf16> to vector<16x8xbf16>
    %46 = vector.extract_strided_slice %11 {offsets = [0, 16], sizes = [16, 8], strides = [1, 1]} : vector<16x32xbf16> to vector<16x8xbf16>
    %47 = vector.extract_strided_slice %12 {offsets = [0, 16], sizes = [16, 8], strides = [1, 1]} : vector<16x32xbf16> to vector<16x8xbf16>
    %cst_19 = arith.constant dense<0.000000e+00> : vector<16x16xf32>
    %48 = tpu.matmul %45, %46, %cst_19 {dimension_numbers = #tpu.dot_dimension_numbers<[1], [1], [0], [0], [0, 0, 1, 0], [], []>} : vector<16x8xbf16>, vector<16x8xbf16>, vector<16x16xf32> -> vector<16x16xf32>
    %cst_20 = arith.constant dense<0xFF800000> : vector<16xf32>
    %49 = vector.multi_reduction <maximumf>, %48, %cst_20 [1] : vector<16x16xf32> to vector<16xf32>
    %50 = vector.shape_cast %49 : vector<16xf32> to vector<16x1xf32>
    %51 = vector.broadcast %50 : vector<16x1xf32> to vector<16x16xf32>
    %52 = arith.subf %48, %51 : vector<16x16xf32>
    %53 = math.exp %52 : vector<16x16xf32>
    %cst_21 = arith.constant dense<0.000000e+00> : vector<16xf32>
    %54 = vector.multi_reduction <add>, %53, %cst_21 [1] : vector<16x16xf32> to vector<16xf32>
    %55 = vector.shape_cast %54 : vector<16xf32> to vector<16x1xf32>
    %56 = arith.truncf %53 : vector<16x16xf32> to vector<16x16xbf16>
    %cst_22 = arith.constant dense<0.000000e+00> : vector<16x8xf32>
    %57 = tpu.matmul %56, %47, %cst_22 {dimension_numbers = #tpu.dot_dimension_numbers<[1], [0], [0], [1], [0, 0, 1, 1], [], []>} : vector<16x16xbf16>, vector<16x8xbf16>, vector<16x8xf32> -> vector<16x8xf32>
    %58 = tpu.reciprocal %55 {approx = true} : vector<16x1xf32> -> vector<16x1xf32>
    %59 = vector.broadcast %58 : vector<16x1xf32> to vector<16x8xf32>
    %60 = arith.mulf %57, %59 : vector<16x8xf32>
    %61 = vector.extract_strided_slice %10 {offsets = [0, 24], sizes = [16, 8], strides = [1, 1]} : vector<16x32xbf16> to vector<16x8xbf16>
    %62 = vector.extract_strided_slice %11 {offsets = [0, 24], sizes = [16, 8], strides = [1, 1]} : vector<16x32xbf16> to vector<16x8xbf16>
    %63 = vector.extract_strided_slice %12 {offsets = [0, 24], sizes = [16, 8], strides = [1, 1]} : vector<16x32xbf16> to vector<16x8xbf16>
    %cst_23 = arith.constant dense<0.000000e+00> : vector<16x16xf32>
    %64 = tpu.matmul %61, %62, %cst_23 {dimension_numbers = #tpu.dot_dimension_numbers<[1], [1], [0], [0], [0, 0, 1, 0], [], []>} : vector<16x8xbf16>, vector<16x8xbf16>, vector<16x16xf32> -> vector<16x16xf32>
    %cst_24 = arith.constant dense<0xFF800000> : vector<16xf32>
    %65 = vector.multi_reduction <maximumf>, %64, %cst_24 [1] : vector<16x16xf32> to vector<16xf32>
    %66 = vector.shape_cast %65 : vector<16xf32> to vector<16x1xf32>
    %67 = vector.broadcast %66 : vector<16x1xf32> to vector<16x16xf32>
    %68 = arith.subf %64, %67 : vector<16x16xf32>
    %69 = math.exp %68 : vector<16x16xf32>
    %cst_25 = arith.constant dense<0.000000e+00> : vector<16xf32>
    %70 = vector.multi_reduction <add>, %69, %cst_25 [1] : vector<16x16xf32> to vector<16xf32>
    %71 = vector.shape_cast %70 : vector<16xf32> to vector<16x1xf32>
    %72 = arith.truncf %69 : vector<16x16xf32> to vector<16x16xbf16>
    %cst_26 = arith.constant dense<0.000000e+00> : vector<16x8xf32>
    %73 = tpu.matmul %72, %63, %cst_26 {dimension_numbers = #tpu.dot_dimension_numbers<[1], [0], [0], [1], [0, 0, 1, 1], [], []>} : vector<16x16xbf16>, vector<16x8xbf16>, vector<16x8xf32> -> vector<16x8xf32>
    %74 = tpu.reciprocal %71 {approx = true} : vector<16x1xf32> -> vector<16x1xf32>
    %75 = vector.broadcast %74 : vector<16x1xf32> to vector<16x8xf32>
    %76 = arith.mulf %73, %75 : vector<16x8xf32>
    %77 = tpu.concatenate %28, %44, %60, %76 in 1 : vector<16x8xf32>, vector<16x8xf32>, vector<16x8xf32>, vector<16x8xf32> -> vector<16x32xf32>
    %78 = arith.truncf %77 : vector<16x32xf32> to vector<16x32xbf16>
    %c0_27 = arith.constant 0 : index
    %c0_28 = arith.constant 0 : index
    %79 = vector.load %arg8[%c0_27, %c0_28] : memref<32x32xbf16, #tpu.memory_space<vmem>>, vector<32x32xbf16>
    %cst_29 = arith.constant dense<0.000000e+00> : vector<16x32xf32>
    %80 = tpu.matmul %78, %79, %cst_29 {dimension_numbers = #tpu.dot_dimension_numbers<[1], [0], [0], [1], [0, 0, 1, 1], [], []>} : vector<16x32xbf16>, vector<32x32xbf16>, vector<16x32xf32> -> vector<16x32xf32>
    %c0_30 = arith.constant 0 : index
    %c0_31 = arith.constant 0 : index
    %81 = vector.load %arg9[%c0_30, %c0_31] : memref<1x32xf32, #tpu.memory_space<vmem>>, vector<1x32xf32>
    %82 = vector.broadcast %81 : vector<1x32xf32> to vector<16x32xf32>
    %83 = arith.addf %80, %82 : vector<16x32xf32>
    %c0_32 = arith.constant 0 : index
    %c0_33 = arith.constant 0 : index
    %84 = vector.load %arg10[%c0_32, %c0_33] : memref<32x64xbf16, #tpu.memory_space<vmem>>, vector<32x64xbf16>
    %cst_34 = arith.constant dense<0.000000e+00> : vector<16x64xf32>
    %85 = tpu.matmul %4, %84, %cst_34 {dimension_numbers = #tpu.dot_dimension_numbers<[1], [0], [0], [1], [0, 0, 1, 1], [], []>} : vector<16x32xbf16>, vector<32x64xbf16>, vector<16x64xf32> -> vector<16x64xf32>
    %86 = arith.truncf %83 : vector<16x32xf32> to vector<16x32xbf16>
    %c0_35 = arith.constant 0 : index
    %c0_36 = arith.constant 0 : index
    %87 = vector.load %arg11[%c0_35, %c0_36] : memref<32x64xbf16, #tpu.memory_space<vmem>>, vector<32x64xbf16>
    %cst_37 = arith.constant dense<0.000000e+00> : vector<16x64xf32>
    %88 = tpu.matmul %86, %87, %cst_37 {dimension_numbers = #tpu.dot_dimension_numbers<[1], [0], [0], [1], [0, 0, 1, 1], [], []>} : vector<16x32xbf16>, vector<32x64xbf16>, vector<16x64xf32> -> vector<16x64xf32>
    %89 = arith.addf %85, %88 : vector<16x64xf32>
    %c0_38 = arith.constant 0 : index
    %c0_39 = arith.constant 0 : index
    %90 = vector.load %arg12[%c0_38, %c0_39] : memref<1x64xf32, #tpu.memory_space<vmem>>, vector<1x64xf32>
    %91 = vector.broadcast %90 : vector<1x64xf32> to vector<16x64xf32>
    %92 = arith.addf %89, %91 : vector<16x64xf32>
    %cst_40 = arith.constant 0.000000e+00 : f32
    %93 = vector.broadcast %cst_40 : f32 to vector<16x64xf32>
    %94 = arith.maximumf %92, %93 : vector<16x64xf32>
    %95 = arith.truncf %94 : vector<16x64xf32> to vector<16x64xbf16>
    %c0_41 = arith.constant 0 : index
    %c0_42 = arith.constant 0 : index
    %96 = vector.load %arg13[%c0_41, %c0_42] : memref<64x32xbf16, #tpu.memory_space<vmem>>, vector<64x32xbf16>
    %cst_43 = arith.constant dense<0.000000e+00> : vector<16x32xf32>
    %97 = tpu.matmul %95, %96, %cst_43 {dimension_numbers = #tpu.dot_dimension_numbers<[1], [0], [0], [1], [0, 0, 1, 1], [], []>} : vector<16x64xbf16>, vector<64x32xbf16>, vector<16x32xf32> -> vector<16x32xf32>
    %c0_44 = arith.constant 0 : index
    %c0_45 = arith.constant 0 : index
    %98 = vector.load %arg14[%c0_44, %c0_45] : memref<1x32xf32, #tpu.memory_space<vmem>>, vector<1x32xf32>
    %99 = vector.broadcast %98 : vector<1x32xf32> to vector<16x32xf32>
    %100 = arith.addf %97, %99 : vector<16x32xf32>
    %c0_46 = arith.constant 0 : index
    %c0_47 = arith.constant 0 : index
    %c0_48 = arith.constant 0 : index
    %101 = vector.load %arg15[%c0_46, %c0_47, %c0_48] : memref<1x16x32xf32, #tpu.memory_space<vmem>>, vector<1x16x32xf32>
    %102 = vector.shape_cast %101 : vector<1x16x32xf32> to vector<16x32xf32>
    %103 = vector.shape_cast %100 : vector<16x32xf32> to vector<1x16x32xf32>
    tpu.vector_store %arg15[%c0_46, %c0_47, %c0_48], %103 {strides = array<i32>} : memref<1x16x32xf32, #tpu.memory_space<vmem>>, vector<1x16x32xf32>,
    return
  }
  func.func @transform_0(%arg0: i32, %arg1: i32) -> (i32, i32, i32) {
    %c0_i32 = arith.constant 0 : i32
    %c0_i32_0 = arith.constant 0 : i32
    return %arg0, %arg1, %c0_i32 : i32, i32, i32
  }
  func.func @transform_1(%arg0: i32, %arg1: i32) -> (i32, i32, i32) {
    %c0_i32 = arith.constant 0 : i32
    %c0_i32_0 = arith.constant 0 : i32
    %c0_i32_1 = arith.constant 0 : i32
    return %arg0, %c0_i32, %c0_i32_0 : i32, i32, i32
  }
  func.func @transform_2(%arg0: i32, %arg1: i32) -> (i32, i32) {
    %c0_i32 = arith.constant 0 : i32
    %c0_i32_0 = arith.constant 0 : i32
    %c0_i32_1 = arith.constant 0 : i32
    return %c0_i32, %c0_i32_0 : i32, i32
  }
  func.func @transform_3(%arg0: i32, %arg1: i32) -> (i32, i32) {
    %c0_i32 = arith.constant 0 : i32
    %c0_i32_0 = arith.constant 0 : i32
    %c0_i32_1 = arith.constant 0 : i32
    return %c0_i32, %c0_i32_0 : i32, i32
  }
  func.func @transform_4(%arg0: i32, %arg1: i32) -> (i32, i32) {
    %c0_i32 = arith.constant 0 : i32
    %c0_i32_0 = arith.constant 0 : i32
    %c0_i32_1 = arith.constant 0 : i32
    return %c0_i32, %c0_i32_0 : i32, i32
  }
  func.func @transform_5(%arg0: i32, %arg1: i32) -> (i32, i32) {
    %c0_i32 = arith.constant 0 : i32
    %c0_i32_0 = arith.constant 0 : i32
    %c0_i32_1 = arith.constant 0 : i32
    return %c0_i32, %c0_i32_0 : i32, i32
  }
  func.func @transform_6(%arg0: i32, %arg1: i32) -> (i32, i32) {
    %c0_i32 = arith.constant 0 : i32
    %c0_i32_0 = arith.constant 0 : i32
    %c0_i32_1 = arith.constant 0 : i32
    return %c0_i32, %c0_i32_0 : i32, i32
  }
  func.func @transform_7(%arg0: i32, %arg1: i32) -> (i32, i32) {
    %c0_i32 = arith.constant 0 : i32
    %c0_i32_0 = arith.constant 0 : i32
    %c0_i32_1 = arith.constant 0 : i32
    return %c0_i32, %c0_i32_0 : i32, i32
  }
  func.func @transform_8(%arg0: i32, %arg1: i32) -> (i32, i32) {
    %c0_i32 = arith.constant 0 : i32
    %c0_i32_0 = arith.constant 0 : i32
    %c0_i32_1 = arith.constant 0 : i32
    return %c0_i32, %c0_i32_0 : i32, i32
  }
  func.func @transform_9(%arg0: i32, %arg1: i32) -> (i32, i32) {
    %c0_i32 = arith.constant 0 : i32
    %c0_i32_0 = arith.constant 0 : i32
    %c0_i32_1 = arith.constant 0 : i32
    return %c0_i32, %c0_i32_0 : i32, i32
  }
  func.func @transform_10(%arg0: i32, %arg1: i32) -> (i32, i32) {
    %c0_i32 = arith.constant 0 : i32
    %c0_i32_0 = arith.constant 0 : i32
    %c0_i32_1 = arith.constant 0 : i32
    return %c0_i32, %c0_i32_0 : i32, i32
  }
  func.func @transform_11(%arg0: i32, %arg1: i32) -> (i32, i32) {
    %c0_i32 = arith.constant 0 : i32
    %c0_i32_0 = arith.constant 0 : i32
    %c0_i32_1 = arith.constant 0 : i32
    return %c0_i32, %c0_i32_0 : i32, i32
  }
  func.func @transform_12(%arg0: i32, %arg1: i32) -> (i32, i32) {
    %c0_i32 = arith.constant 0 : i32
    %c0_i32_0 = arith.constant 0 : i32
    %c0_i32_1 = arith.constant 0 : i32
    return %c0_i32, %c0_i32_0 : i32, i32
  }
  func.func @transform_13(%arg0: i32, %arg1: i32) -> (i32, i32, i32) {
    %c0_i32 = arith.constant 0 : i32
    %c0_i32_0 = arith.constant 0 : i32
    return %arg0, %arg1, %c0_i32 : i32, i32, i32
  }
}

</mosaic_0001>

<llo_original>
// kernel: tpu_custom_call.1
$region0: #{tpu_custom_call.1}
  #allocation0 [shape = 'u32[]', space=smem, size = 0x4, offset = 0x4, fixed_abs, tag = 'smem constant byte address 0x4 - core index']
  #allocation1 [shape = 'u32[144,128]{1,0:T(1,128)}', space=vmem, size = 0x12000, scoped, tag = 'internal scratch']
  #allocation2 [shape = 'bf16[16,32]{1,0:T(16,128)(2,1)}', space=vmem, size = 0x1000, scoped, tag = 'scratch operand']
  #allocation3 [shape = 'bf16[16,32]{1,0:T(16,128)(2,1)}', space=vmem, size = 0x1000, scoped, tag = 'scratch operand']
  %s0 = inlined_call_operand.vmem [shape: bf16[2,16,32], index: 0, kind: input, shape index: {}]
  %s1 = inlined_call_operand.vmem [shape: bf16[2,16,32], index: 1, kind: input, shape index: {}]
  %s2 = inlined_call_operand.vmem [shape: bf16[32,32], index: 2, kind: input, shape index: {}]
  %s3 = inlined_call_operand.vmem [shape: f32[1,32], index: 3, kind: input, shape index: {}]
  %s4 = inlined_call_operand.hbm [shape: bf16[32,64], index: 4, kind: input, shape index: {}]
  %s5 = inlined_call_operand.vmem [shape: f32[1,64], index: 5, kind: input, shape index: {}]
  %s6 = inlined_call_operand.hbm [shape: bf16[32,32], index: 6, kind: input, shape index: {}]
  %s7 = inlined_call_operand.hbm [shape: f32[1,32], index: 7, kind: input, shape index: {}]
  %s8 = inlined_call_operand.hbm [shape: bf16[32,64], index: 8, kind: input, shape index: {}]
  %s9 = inlined_call_operand.vmem [shape: bf16[32,64], index: 9, kind: input, shape index: {}]
  %s10 = inlined_call_operand.vmem [shape: f32[1,64], index: 10, kind: input, shape index: {}]
  %s11 = inlined_call_operand.vmem [shape: bf16[64,32], index: 11, kind: input, shape index: {}]
  %s12 = inlined_call_operand.vmem [shape: f32[1,32], index: 12, kind: input, shape index: {}]
  %s13 = inlined_call_operand.hbm [shape: f32[2,16,32], index: 13, kind: output, shape index: {}]
  %s14 = sld [smem:[#allocation0]]
  $region105: #{tpu_custom_call.1} parent=0
    _
  %s16 = ssub.s32 1, %s14
  %s17 = scalar_select 0, %s16, %s14
  $region1: #{tpu_custom_call.1} parent=0
    #allocation4 [shape = 'u8[8192]{0}', space=vmem, size = 0x2000, scoped, tag = 'input window, operand 4, single buffered']
    #allocation5 [shape = 's32[2]{0}', space=sflag, size = 0x8, scoped, tag = 'scoped memory for tpu_custom_call.1']
    #allocation6 [shape = 's32[2]{0}', space=sflag, size = 0x8, scoped, tag = 'scoped memory for tpu_custom_call.1']
    #allocation7 [shape = 'u8[8192]{0}', space=vmem, size = 0x2000, scoped, tag = 'input window, operand 6, single buffered']
    #allocation8 [shape = 's32[1]{0}', space=sflag, size = 0x4, scoped, tag = 'scoped memory for tpu_custom_call.1']
    #allocation9 [shape = 'u8[512]{0}', space=vmem, size = 0x400, scoped, tag = 'input window, operand 7, single buffered']
    #allocation10 [shape = 'u8[8192]{0}', space=vmem, size = 0x2000, scoped, tag = 'input window, operand 8, single buffered']
    #allocation11 [shape = 's32[1]{0}', space=sflag, size = 0x4, scoped, tag = 'scoped memory for tpu_custom_call.1']
    #allocation12 [shape = 'u8[16384]{0}', space=vmem, size = 0x4000, scoped, tag = 'output window, operand 0']
    %18 = vsyncpa [#allocation5], 0
    %19 = vsyncpa [#allocation8], 0
    %20 = vsyncpa [#allocation11], 0
    %21 = vsyncpa [#allocation6], 0
    %s22 = scalar_lea.sflag [#allocation6], 1
    %23 = vsyncpa %s22, 0
    loop: start=0, step=1, limit=4
    $region2: #{tpu_custom_call.1} parent=1 // loop_pre_header
      _
    $region3: #{tpu_custom_call.1} parent=1 // loop_header
      %s25 = sphi 0, %s29
      %p26 = scmp.ge.s32.totalorder %s25, 4
      %s32 = sphi 0, %s44
      %s33 = sphi 0, %s40
      %s34 = sphi 0, %s32
      %s35 = sphi 0, %s33
      %s36 = sphi 0, %s34
      %s37 = sphi 0, %s35
      %s49 = sphi 0, %s51
      %s52 = sphi 0, %s49
      %s53 = sphi 0, %s52
      %s69 = sphi 0, %s53
      %s75 = sphi 0, %s77
      %s78 = sphi 0, %s75
      %s79 = sphi 0, %s78
      %s95 = sphi 0, %s79
      %s99 = sphi 0, %s99
      %s101 = sphi 0, %s99
      %s102 = sphi 0, %s101
      %s116 = sphi 0, %s102
      %s120 = sphi 0, %s120
      %s122 = sphi 0, %s120
      %s123 = sphi 0, %s122
      %s137 = sphi 0, %s123
      %s141 = sphi 0, %s141
      %s143 = sphi 0, %s141
      %s144 = sphi 0, %s143
      %s158 = sphi 0, %s144
      %s162 = sphi 0, %s162
      %s164 = sphi 0, %s162
      %s165 = sphi 0, %s164
      %s179 = sphi 0, %s165
      %s183 = sphi 0, %s183
      %s185 = sphi 0, %s183
      %s186 = sphi 0, %s185
      %s200 = sphi 0, %s186
      %s204 = sphi 0, %s204
      %s206 = sphi 0, %s204
      %s207 = sphi 0, %s206
      %s221 = sphi 0, %s207
      %s225 = sphi 0, %s225
      %s227 = sphi 0, %s225
      %s228 = sphi 0, %s227
      %s242 = sphi 0, %s228
      %s246 = sphi 0, %s246
      %s248 = sphi 0, %s246
      %s249 = sphi 0, %s248
      %s263 = sphi 0, %s249
      %s267 = sphi 0, %s267
      %s269 = sphi 0, %s267
      %s270 = sphi 0, %s269
      %s284 = sphi 0, %s270
      %s288 = sphi 0, %s288
      %s290 = sphi 0, %s288
      %s291 = sphi 0, %s290
      %s305 = sphi 0, %s291
      %s309 = sphi 0, %s309
      %s311 = sphi 0, %s309
      %s312 = sphi 0, %s311
      %s326 = sphi 0, %s312
      %s334 = sphi 0, %s336
      %s337 = sphi 0, %s334
      %s338 = sphi 0, %s337
      %s354 = sphi 0, %s338
    $region4: #{tpu_custom_call.1} parent=1 // loop_header_branch
      %28 = sbr.rel (%p26) target = $region8
    $region5: #{tpu_custom_call.1} parent=1 // loop_body
      %s30 = ssub.s32 %s25, 1
      %s31 = ssub.s32 %s25, 2
      %s38 = sadd.s32 1, %s33
      %p39 = scmp.ge.s32.totalorder %s38, 1
      %s40 = scalar_select %p39, 0, %s38
      %s41 = sadd.s32 1, %s32
      %s42 = scalar_select %p39, %s41, %s32
      %p43 = scmp.ge.s32.totalorder %s42, 2
      %s44 = scalar_select %p43, 0, %s42
      %s45 = ssub.s32 %s32, %s44
      %s46 = ssub.s32 %s33, %s40
      %s47 = sor.u32 %s45, %s46
      %p48 = scmp.eq.s32.totalorder %s47, 0
      %s50 = sadd.s32 %s49, 1
      %s51 = scalar_select %p48, %s49, %s50
      %p54 = pneg %p48
      %p55 = scmp.eq.s32.totalorder %s25, 1
      %p56 = por %p54, %p55
      %p57 = scmp.ne.s32.totalorder %s49, %s52
      %p58 = scmp.eq.s32.totalorder %s25, 0
      %p59 = por %p57, %p58
      %p60 = scmp.ne.s32.totalorder %s49, %s52
      %p61 = scmp.eq.s32.totalorder %s30, 1
      %p62 = por %p60, %p61
      %p63 = scmp.ne.s32.totalorder %s52, %s53
      %p64 = scmp.eq.s32.totalorder %s30, 0
      %p65 = por %p63, %p64
      %p66 = scmp.ne.s32.totalorder %s52, %s53
      %p67 = scmp.eq.s32.totalorder %s31, 1
      %p68 = por %p66, %p67
      %p70 = scmp.ne.s32.totalorder %s53, %s69
      %p71 = scmp.eq.s32.totalorder %s31, 0
      %p72 = por %p70, %p71
      %s73 = ssub.s32 %s32, %s44
      %p74 = scmp.eq.s32.totalorder %s73, 0
      %s76 = sadd.s32 %s75, 1
      %s77 = scalar_select %p74, %s75, %s76
      %p80 = pneg %p74
      %p81 = scmp.eq.s32.totalorder %s25, 1
      %p82 = por %p80, %p81
      %p83 = scmp.ne.s32.totalorder %s75, %s78
      %p84 = scmp.eq.s32.totalorder %s25, 0
      %p85 = por %p83, %p84
      %p86 = scmp.ne.s32.totalorder %s75, %s78
      %p87 = scmp.eq.s32.totalorder %s30, 1
      %p88 = por %p86, %p87
      %p89 = scmp.ne.s32.totalorder %s78, %s79
      %p90 = scmp.eq.s32.totalorder %s30, 0
      %p91 = por %p89, %p90
      %p92 = scmp.ne.s32.totalorder %s78, %s79
      %p93 = scmp.eq.s32.totalorder %s31, 1
      %p94 = por %p92, %p93
      %p96 = scmp.ne.s32.totalorder %s79, %s95
      %p97 = scmp.eq.s32.totalorder %s31, 0
      %p98 = por %p96, %p97
      %s100 = sadd.s32 %s99, 1
      %p103 = scmp.eq.s32.totalorder %s25, 1
      %p104 = scmp.ne.s32.totalorder %s99, %s101
      %p105 = scmp.eq.s32.totalorder %s25, 0
      %p106 = por %p104, %p105
      %p107 = scmp.ne.s32.totalorder %s99, %s101
      %p108 = scmp.eq.s32.totalorder %s30, 1
      %p109 = por %p107, %p108
      %p110 = scmp.ne.s32.totalorder %s101, %s102
      %p111 = scmp.eq.s32.totalorder %s30, 0
      %p112 = por %p110, %p111
      %p113 = scmp.ne.s32.totalorder %s101, %s102
      %p114 = scmp.eq.s32.totalorder %s31, 1
      %p115 = por %p113, %p114
      %p117 = scmp.ne.s32.totalorder %s102, %s116
      %p118 = scmp.eq.s32.totalorder %s31, 0
      %p119 = por %p117, %p118
      %s121 = sadd.s32 %s120, 1
      %p124 = scmp.eq.s32.totalorder %s25, 1
      %p125 = scmp.ne.s32.totalorder %s120, %s122
      %p126 = scmp.eq.s32.totalorder %s25, 0
      %p127 = por %p125, %p126
      %p128 = scmp.ne.s32.totalorder %s120, %s122
      %p129 = scmp.eq.s32.totalorder %s30, 1
      %p130 = por %p128, %p129
      %p131 = scmp.ne.s32.totalorder %s122, %s123
      %p132 = scmp.eq.s32.totalorder %s30, 0
      %p133 = por %p131, %p132
      %p134 = scmp.ne.s32.totalorder %s122, %s123
      %p135 = scmp.eq.s32.totalorder %s31, 1
      %p136 = por %p134, %p135
      %p138 = scmp.ne.s32.totalorder %s123, %s137
      %p139 = scmp.eq.s32.totalorder %s31, 0
      %p140 = por %p138, %p139
      %s142 = sadd.s32 %s141, 1
      %p145 = scmp.eq.s32.totalorder %s25, 1
      %p146 = scmp.ne.s32.totalorder %s141, %s143
      %p147 = scmp.eq.s32.totalorder %s25, 0
      %p148 = por %p146, %p147
      %p149 = scmp.ne.s32.totalorder %s141, %s143
      %p150 = scmp.eq.s32.totalorder %s30, 1
      %p151 = por %p149, %p150
      %p152 = scmp.ne.s32.totalorder %s143, %s144
      %p153 = scmp.eq.s32.totalorder %s30, 0
      %p154 = por %p152, %p153
      %p155 = scmp.ne.s32.totalorder %s143, %s144
      %p156 = scmp.eq.s32.totalorder %s31, 1
      %p157 = por %p155, %p156
      %p159 = scmp.ne.s32.totalorder %s144, %s158
      %p160 = scmp.eq.s32.totalorder %s31, 0
      %p161 = por %p159, %p160
      %s163 = sadd.s32 %s162, 1
      %p166 = scmp.eq.s32.totalorder %s25, 1
      %p167 = scmp.ne.s32.totalorder %s162, %s164
      %p168 = scmp.eq.s32.totalorder %s25, 0
      %p169 = por %p167, %p168
      %p170 = scmp.ne.s32.totalorder %s162, %s164
      %p171 = scmp.eq.s32.totalorder %s30, 1
      %p172 = por %p170, %p171
      %p173 = scmp.ne.s32.totalorder %s164, %s165
      %p174 = scmp.eq.s32.totalorder %s30, 0
      %p175 = por %p173, %p174
      %p176 = scmp.ne.s32.totalorder %s164, %s165
      %p177 = scmp.eq.s32.totalorder %s31, 1
      %p178 = por %p176, %p177
      %p180 = scmp.ne.s32.totalorder %s165, %s179
      %p181 = scmp.eq.s32.totalorder %s31, 0
      %p182 = por %p180, %p181
      %s184 = sadd.s32 %s183, 1
      %p187 = scmp.eq.s32.totalorder %s25, 1
      %p188 = scmp.ne.s32.totalorder %s183, %s185
      %p189 = scmp.eq.s32.totalorder %s25, 0
      %p190 = por %p188, %p189
      %p191 = scmp.ne.s32.totalorder %s183, %s185
      %p192 = scmp.eq.s32.totalorder %s30, 1
      %p193 = por %p191, %p192
      %p194 = scmp.ne.s32.totalorder %s185, %s186
      %p195 = scmp.eq.s32.totalorder %s30, 0
      %p196 = por %p194, %p195
      %p197 = scmp.ne.s32.totalorder %s185, %s186
      %p198 = scmp.eq.s32.totalorder %s31, 1
      %p199 = por %p197, %p198
      %p201 = scmp.ne.s32.totalorder %s186, %s200
      %p202 = scmp.eq.s32.totalorder %s31, 0
      %p203 = por %p201, %p202
      %s205 = sadd.s32 %s204, 1
      %p208 = scmp.eq.s32.totalorder %s25, 1
      %p209 = scmp.ne.s32.totalorder %s204, %s206
      %p210 = scmp.eq.s32.totalorder %s25, 0
      %p211 = por %p209, %p210
      %p212 = scmp.ne.s32.totalorder %s204, %s206
      %p213 = scmp.eq.s32.totalorder %s30, 1
      %p214 = por %p212, %p213
      %p215 = scmp.ne.s32.totalorder %s206, %s207
      %p216 = scmp.eq.s32.totalorder %s30, 0
      %p217 = por %p215, %p216
      %p218 = scmp.ne.s32.totalorder %s206, %s207
      %p219 = scmp.eq.s32.totalorder %s31, 1
      %p220 = por %p218, %p219
      %p222 = scmp.ne.s32.totalorder %s207, %s221
      %p223 = scmp.eq.s32.totalorder %s31, 0
      %p224 = por %p222, %p223
      %s226 = sadd.s32 %s225, 1
      %p229 = scmp.eq.s32.totalorder %s25, 1
      %p230 = scmp.ne.s32.totalorder %s225, %s227
      %p231 = scmp.eq.s32.totalorder %s25, 0
      %p232 = por %p230, %p231
      %p233 = scmp.ne.s32.totalorder %s225, %s227
      %p234 = scmp.eq.s32.totalorder %s30, 1
      %p235 = por %p233, %p234
      %p236 = scmp.ne.s32.totalorder %s227, %s228
      %p237 = scmp.eq.s32.totalorder %s30, 0
      %p238 = por %p236, %p237
      %p239 = scmp.ne.s32.totalorder %s227, %s228
      %p240 = scmp.eq.s32.totalorder %s31, 1
      %p241 = por %p239, %p240
      %p243 = scmp.ne.s32.totalorder %s228, %s242
      %p244 = scmp.eq.s32.totalorder %s31, 0
      %p245 = por %p243, %p244
      %s247 = sadd.s32 %s246, 1
      %p250 = scmp.eq.s32.totalorder %s25, 1
      %p251 = scmp.ne.s32.totalorder %s246, %s248
      %p252 = scmp.eq.s32.totalorder %s25, 0
      %p253 = por %p251, %p252
      %p254 = scmp.ne.s32.totalorder %s246, %s248
      %p255 = scmp.eq.s32.totalorder %s30, 1
      %p256 = por %p254, %p255
      %p257 = scmp.ne.s32.totalorder %s248, %s249
      %p258 = scmp.eq.s32.totalorder %s30, 0
      %p259 = por %p257, %p258
      %p260 = scmp.ne.s32.totalorder %s248, %s249
      %p261 = scmp.eq.s32.totalorder %s31, 1
      %p262 = por %p260, %p261
      %p264 = scmp.ne.s32.totalorder %s249, %s263
      %p265 = scmp.eq.s32.totalorder %s31, 0
      %p266 = por %p264, %p265
      %s268 = sadd.s32 %s267, 1
      %p271 = scmp.eq.s32.totalorder %s25, 1
      %p272 = scmp.ne.s32.totalorder %s267, %s269
      %p273 = scmp.eq.s32.totalorder %s25, 0
      %p274 = por %p272, %p273
      %p275 = scmp.ne.s32.totalorder %s267, %s269
      %p276 = scmp.eq.s32.totalorder %s30, 1
      %p277 = por %p275, %p276
      %p278 = scmp.ne.s32.totalorder %s269, %s270
      %p279 = scmp.eq.s32.totalorder %s30, 0
      %p280 = por %p278, %p279
      %p281 = scmp.ne.s32.totalorder %s269, %s270
      %p282 = scmp.eq.s32.totalorder %s31, 1
      %p283 = por %p281, %p282
      %p285 = scmp.ne.s32.totalorder %s270, %s284
      %p286 = scmp.eq.s32.totalorder %s31, 0
      %p287 = por %p285, %p286
      %s289 = sadd.s32 %s288, 1
      %p292 = scmp.eq.s32.totalorder %s25, 1
      %p293 = scmp.ne.s32.totalorder %s288, %s290
      %p294 = scmp.eq.s32.totalorder %s25, 0
      %p295 = por %p293, %p294
      %p296 = scmp.ne.s32.totalorder %s288, %s290
      %p297 = scmp.eq.s32.totalorder %s30, 1
      %p298 = por %p296, %p297
      %p299 = scmp.ne.s32.totalorder %s290, %s291
      %p300 = scmp.eq.s32.totalorder %s30, 0
      %p301 = por %p299, %p300
      %p302 = scmp.ne.s32.totalorder %s290, %s291
      %p303 = scmp.eq.s32.totalorder %s31, 1
      %p304 = por %p302, %p303
      %p306 = scmp.ne.s32.totalorder %s291, %s305
      %p307 = scmp.eq.s32.totalorder %s31, 0
      %p308 = por %p306, %p307
      %s310 = sadd.s32 %s309, 1
      %p313 = scmp.eq.s32.totalorder %s25, 1
      %p314 = scmp.ne.s32.totalorder %s309, %s311
      %p315 = scmp.eq.s32.totalorder %s25, 0
      %p316 = por %p314, %p315
      %p317 = scmp.ne.s32.totalorder %s309, %s311
      %p318 = scmp.eq.s32.totalorder %s30, 1
      %p319 = por %p317, %p318
      %p320 = scmp.ne.s32.totalorder %s311, %s312
      %p321 = scmp.eq.s32.totalorder %s30, 0
      %p322 = por %p320, %p321
      %p323 = scmp.ne.s32.totalorder %s311, %s312
      %p324 = scmp.eq.s32.totalorder %s31, 1
      %p325 = por %p323, %p324
      %p327 = scmp.ne.s32.totalorder %s312, %s326
      %p328 = scmp.eq.s32.totalorder %s31, 0
      %p329 = por %p327, %p328
      %s330 = ssub.s32 %s32, %s44
      %s331 = ssub.s32 %s33, %s40
      %s332 = sor.u32 %s330, %s331
      %p333 = scmp.eq.s32.totalorder %s332, 0
      %s335 = sadd.s32 %s334, 1
      %s336 = scalar_select %p333, %s334, %s335
      %p339 = pneg %p333
      %p340 = scmp.eq.s32.totalorder %s25, 1
      %p341 = por %p339, %p340
      %p342 = scmp.ne.s32.totalorder %s334, %s337
      %p343 = scmp.eq.s32.totalorder %s25, 0
      %p344 = por %p342, %p343
      %p345 = scmp.ne.s32.totalorder %s334, %s337
      %p346 = scmp.eq.s32.totalorder %s30, 1
      %p347 = por %p345, %p346
      %p348 = scmp.ne.s32.totalorder %s337, %s338
      %p349 = scmp.eq.s32.totalorder %s30, 0
      %p350 = por %p348, %p349
      %p351 = scmp.ne.s32.totalorder %s337, %s338
      %p352 = scmp.eq.s32.totalorder %s31, 1
      %p353 = por %p351, %p352
      %p355 = scmp.ne.s32.totalorder %s338, %s354
      %p356 = scmp.eq.s32.totalorder %s31, 0
      %p357 = por %p355, %p356
      %p358 = scmp.le.s32.totalorder 1, %s25
      %p359 = scmp.lt.s32.totalorder %s25, 3
      %p360 = pnand %p358, %p359
      %p361 = pneg %p360
      // Predicated region
      $region9: #{tpu_custom_call.1} parent=5 // pred_check
        _
      $region10: #{tpu_custom_call.1} parent=5 // pred_check_branch
        %363 = sbr.rel (%p360) target = $region12
      $region11: #{tpu_custom_call.1} parent=5 // pred_region
        %s364 = ssub.s32 %s25, 1
        // Predicated region
        $region13: #{tpu_custom_call.1} parent=11 // pred_check
          %p365 = pneg %p112
        $region14: #{tpu_custom_call.1} parent=11 // pred_check_branch
          %367 = sbr.rel (%p365) target = $region16
        $region15: #{tpu_custom_call.1} parent=11 // pred_region
          _
        $region16: #{tpu_custom_call.1} parent=11 // pred_fallthru
          _
        // Predicated region
        $region17: #{tpu_custom_call.1} parent=11 // pred_check
          %p368 = pneg %p133
        $region18: #{tpu_custom_call.1} parent=11 // pred_check_branch
          %370 = sbr.rel (%p368) target = $region20
        $region19: #{tpu_custom_call.1} parent=11 // pred_region
          _
        $region20: #{tpu_custom_call.1} parent=11 // pred_fallthru
          _
        // Predicated region
        $region21: #{tpu_custom_call.1} parent=11 // pred_check
          %p371 = pneg %p154
        $region22: #{tpu_custom_call.1} parent=11 // pred_check_branch
          %373 = sbr.rel (%p371) target = $region24
        $region23: #{tpu_custom_call.1} parent=11 // pred_region
          %s375 = ssub.s32 256, 256
          %376 = vsyncadd [#allocation5], %s375
          %s377 = sshll.u32 [#allocation4], 4
          %s378 = int_to_ptr.vmem [resolvable:$true] %s377
          %383 = dma.hbm_to_vmem [thread:$0]  %s4, 256, %s378, [#allocation5], 64, 64, 4
        $region24: #{tpu_custom_call.1} parent=11 // pred_fallthru
          _
        // Predicated region
        $region25: #{tpu_custom_call.1} parent=11 // pred_check
          %p384 = pneg %p175
        $region26: #{tpu_custom_call.1} parent=11 // pred_check_branch
          %386 = sbr.rel (%p384) target = $region28
        $region27: #{tpu_custom_call.1} parent=11 // pred_region
          _
        $region28: #{tpu_custom_call.1} parent=11 // pred_fallthru
          _
        // Predicated region
        $region29: #{tpu_custom_call.1} parent=11 // pred_check
          %p387 = pneg %p196
        $region30: #{tpu_custom_call.1} parent=11 // pred_check_branch
          %389 = sbr.rel (%p387) target = $region32
        $region31: #{tpu_custom_call.1} parent=11 // pred_region
          %s391 = ssub.s32 256, 256
          %392 = vsyncadd [#allocation8], %s391
          %s393 = sshll.u32 [#allocation7], 4
          %s394 = int_to_ptr.vmem [resolvable:$true] %s393
          %399 = dma.hbm_to_vmem [thread:$0]  %s6, 256, %s394, [#allocation8], 64, 64, 4
        $region32: #{tpu_custom_call.1} parent=11 // pred_fallthru
          _
        // Predicated region
        $region33: #{tpu_custom_call.1} parent=11 // pred_check
          %p400 = pneg %p217
        $region34: #{tpu_custom_call.1} parent=11 // pred_check_branch
          %402 = sbr.rel (%p400) target = $region36
        $region35: #{tpu_custom_call.1} parent=11 // pred_region
          %s404 = ssub.s32 16, 16
          %405 = vsyncadd [#allocation8], %s404
          %s407 = sshll.u32 [#allocation9], 4
          %s408 = int_to_ptr.vmem [resolvable:$true] %s407
          %410 = dma.hbm_to_vmem [thread:$0]  %s7, 16, %s408, [#allocation8]
        $region36: #{tpu_custom_call.1} parent=11 // pred_fallthru
          _
        // Predicated region
        $region37: #{tpu_custom_call.1} parent=11 // pred_check
          %p411 = pneg %p238
        $region38: #{tpu_custom_call.1} parent=11 // pred_check_branch
          %413 = sbr.rel (%p411) target = $region40
        $region39: #{tpu_custom_call.1} parent=11 // pred_region
          %s415 = ssub.s32 256, 256
          %416 = vsyncadd [#allocation11], %s415
          %s417 = sshll.u32 [#allocation10], 4
          %s418 = int_to_ptr.vmem [resolvable:$true] %s417
          %423 = dma.hbm_to_vmem [thread:$0]  %s8, 256, %s418, [#allocation11], 64, 64, 4
        $region40: #{tpu_custom_call.1} parent=11 // pred_fallthru
          _
        // Predicated region
        $region41: #{tpu_custom_call.1} parent=11 // pred_check
          %p424 = pneg %p259
        $region42: #{tpu_custom_call.1} parent=11 // pred_check_branch
          %426 = sbr.rel (%p424) target = $region44
        $region43: #{tpu_custom_call.1} parent=11 // pred_region
          _
        $region44: #{tpu_custom_call.1} parent=11 // pred_fallthru
          _
        // Predicated region
        $region45: #{tpu_custom_call.1} parent=11 // pred_check
          %p427 = pneg %p280
        $region46: #{tpu_custom_call.1} parent=11 // pred_check_branch
          %429 = sbr.rel (%p427) target = $region48
        $region47: #{tpu_custom_call.1} parent=11 // pred_region
          _
        $region48: #{tpu_custom_call.1} parent=11 // pred_fallthru
          _
        // Predicated region
        $region49: #{tpu_custom_call.1} parent=11 // pred_check
          %p430 = pneg %p301
        $region50: #{tpu_custom_call.1} parent=11 // pred_check_branch
          %432 = sbr.rel (%p430) target = $region52
        $region51: #{tpu_custom_call.1} parent=11 // pred_region
          _
        $region52: #{tpu_custom_call.1} parent=11 // pred_fallthru
          _
        // Predicated region
        $region53: #{tpu_custom_call.1} parent=11 // pred_check
          %p433 = pneg %p322
        $region54: #{tpu_custom_call.1} parent=11 // pred_check_branch
          %435 = sbr.rel (%p433) target = $region56
        $region55: #{tpu_custom_call.1} parent=11 // pred_region
          _
        $region56: #{tpu_custom_call.1} parent=11 // pred_fallthru
          _
      $region12: #{tpu_custom_call.1} parent=5 // pred_fallthru
        _
      %p436 = scmp.lt.s32.totalorder %s25, 2
      // Predicated region
      $region57: #{tpu_custom_call.1} parent=5 // pred_check
        %p437 = pneg %p436
      $region58: #{tpu_custom_call.1} parent=5 // pred_check_branch
        %439 = sbr.rel (%p437) target = $region60
      $region59: #{tpu_custom_call.1} parent=5 // pred_region
        // Predicated region
        $region61: #{tpu_custom_call.1} parent=59 // pred_check
          %p440 = pneg %p59
        $region62: #{tpu_custom_call.1} parent=59 // pred_check_branch
          %442 = sbr.rel (%p440) target = $region64
        $region63: #{tpu_custom_call.1} parent=59 // pred_region
          %s443 = smul.u32 2, %s33
          %p444 = scmp.lt.s32.totalorder %s32, 1
          %s445 = scalar_select %p444, %s32, 1
          %p446 = scmp.lt.s32.totalorder %s443, 1
          %s447 = scalar_select %p446, %s443, 1
          %s448 = smul.addr %s445, 2
          %s449 = sadd.s32 %s447, %s448
          %s450 = smul.addr %s449, 4
          %s451 = scalar_lea.vmem %s0, %s450
          %s452 = smul.u32 2, %s33
        $region64: #{tpu_custom_call.1} parent=59 // pred_fallthru
          _
        // Predicated region
        $region65: #{tpu_custom_call.1} parent=59 // pred_check
          %p453 = pneg %p85
        $region66: #{tpu_custom_call.1} parent=59 // pred_check_branch
          %455 = sbr.rel (%p453) target = $region68
        $region67: #{tpu_custom_call.1} parent=59 // pred_region
          %p456 = scmp.lt.s32.totalorder %s32, 1
          %s457 = scalar_select %p456, %s32, 1
          %s458 = smul.addr %s457, 2
          %s459 = smul.addr %s458, 4
          %s460 = scalar_lea.vmem %s1, %s459
        $region68: #{tpu_custom_call.1} parent=59 // pred_fallthru
          _
      $region60: #{tpu_custom_call.1} parent=5 // pred_fallthru
        _
      %p461 = scmp.le.s32.totalorder 1, %s25
      %p462 = scmp.lt.s32.totalorder %s25, 3
      %p463 = pnand %p461, %p462
      %p464 = pneg %p463
      // Predicated region
      $region69: #{tpu_custom_call.1} parent=5 // pred_check
        _
      $region70: #{tpu_custom_call.1} parent=5 // pred_check_branch
        %466 = sbr.rel (%p463) target = $region72
      $region71: #{tpu_custom_call.1} parent=5 // pred_region
        %s467 = ssub.s32 %s25, 1
        // Predicated region
        $region73: #{tpu_custom_call.1} parent=71 // pred_check
          %p468 = pneg %p154
        $region74: #{tpu_custom_call.1} parent=71 // pred_check_branch
          %470 = sbr.rel (%p468) target = $region76
        $region75: #{tpu_custom_call.1} parent=71 // pred_region
          %471 = dma.done [#allocation5], 256
        $region76: #{tpu_custom_call.1} parent=71 // pred_fallthru
          _
        // Predicated region
        $region77: #{tpu_custom_call.1} parent=71 // pred_check
          %p472 = pneg %p196
        $region78: #{tpu_custom_call.1} parent=71 // pred_check_branch
          %474 = sbr.rel (%p472) target = $region80
        $region79: #{tpu_custom_call.1} parent=71 // pred_region
          %475 = dma.done [#allocation8], 256
        $region80: #{tpu_custom_call.1} parent=71 // pred_fallthru
          _
        // Predicated region
        $region81: #{tpu_custom_call.1} parent=71 // pred_check
          %p476 = pneg %p217
        $region82: #{tpu_custom_call.1} parent=71 // pred_check_branch
          %478 = sbr.rel (%p476) target = $region84
        $region83: #{tpu_custom_call.1} parent=71 // pred_region
          %479 = dma.done [#allocation8], 16
        $region84: #{tpu_custom_call.1} parent=71 // pred_fallthru
          _
        // Predicated region
        $region85: #{tpu_custom_call.1} parent=71 // pred_check
          %p480 = pneg %p238
        $region86: #{tpu_custom_call.1} parent=71 // pred_check_branch
          %482 = sbr.rel (%p480) target = $region88
        $region87: #{tpu_custom_call.1} parent=71 // pred_region
          %483 = dma.done [#allocation11], 256
        $region88: #{tpu_custom_call.1} parent=71 // pred_fallthru
          _
        %s484 = smul.u32 2, %s35
        %p485 = scmp.lt.s32.totalorder %s34, 1
        %s486 = scalar_select %p485, %s34, 1
        %p487 = scmp.lt.s32.totalorder %s484, 1
        %s488 = scalar_select %p487, %s484, 1
        %s489 = smul.addr %s486, 2
        %s490 = sadd.s32 %s488, %s489
        %s491 = smul.addr %s490, 4
        %s492 = scalar_lea.vmem %s0, %s491
        %p493 = pneg %p65
        %p494 = pneg %p62
        %p495 = scmp.lt.s32.totalorder %s34, 1
        %s496 = scalar_select %p495, %s34, 1
        %s497 = smul.addr %s496, 2
        %s498 = smul.addr %s497, 4
        %s499 = scalar_lea.vmem %s1, %s498
        %p500 = pneg %p91
        %p501 = pneg %p88
        %p502 = pneg %p112
        %p503 = pneg %p109
        %p504 = pneg %p133
        %p505 = pneg %p130
        %p506 = pneg %p154
        %p507 = pneg %p151
        %p508 = pneg %p175
        %p509 = pneg %p172
        %p510 = pneg %p196
        %p511 = pneg %p193
        %p512 = pneg %p217
        %p513 = pneg %p214
        %p514 = pneg %p238
        %p515 = pneg %p235
        %p516 = pneg %p259
        %p517 = pneg %p256
        %p518 = pneg %p280
        %p519 = pneg %p277
        %p520 = pneg %p301
        %p521 = pneg %p298
        %p522 = pneg %p322
        %p523 = pneg %p319
        %p524 = pneg %p350
        %p525 = pneg %p347
        %s526 = sand.u32 %s337, 1
        %s527 = scalar_lea.sflag [#allocation6], %s526
        %s528 = sand.u32 %s337, 1
        %s529 = smul.addr %s528, 16
        %s530 = scalar_lea.vmem [#allocation12], %s529
        %s531 = smul.u32 2, %s35
        %p532 = scmp.lt.s32.totalorder %s34, 1
        %s533 = scalar_select %p532, %s34, 1
        %p534 = scmp.lt.s32.totalorder %s531, 1
        %s535 = scalar_select %p534, %s531, 1
        %s536 = smul.addr %s533, 2
        %s537 = sadd.s32 %s535, %s536
        %s538 = smul.addr %s537, 4
        %s539 = scalar_lea.vmem %s0, %s538
        %s540 = smul.u32 2, %s35
        %p541 = scmp.lt.s32.totalorder %s34, 1
        %s542 = scalar_select %p541, %s34, 1
        %s543 = smul.addr %s542, 2
        %s544 = smul.addr %s543, 4
        %s545 = scalar_lea.vmem %s1, %s544
        %s546 = smul.u32 2, %s35
        %p548 = scmp.eq.s32.totalorder %s35, 0
        // Predicated region
        $region89: #{tpu_custom_call.1} parent=71 // pred_check
          %p549 = pneg %p548
        $region90: #{tpu_custom_call.1} parent=71 // pred_check_branch
          %551 = sbr.rel (%p549) target = $region92
        $region91: #{tpu_custom_call.1} parent=71 // pred_region
          %v552 = vld [vmem:[%s545] sm:$0xf]
          %v553 = vld [vmem:[%s545 + $0x4] sm:$0xf]
          %v554 = vld [vmem:[#allocation4] sm:$0xf]
          %v555 = vld [vmem:[#allocation4 + $0x4] sm:$0xf]
          %v556 = vld [vmem:[#allocation4 + $0x8] sm:$0xf]
          %v557 = vld [vmem:[#allocation4 + $0xc] sm:$0xf]
          %v558 = vld [vmem:[%s5] sm:$0x1]
          %v560 = vlaneseq
          %v561 = vshrl.u32 %v560, 7
          %v562 = vsub.s32 0, %v561
          %v563 = vrot.slane %v558, %v562
          %v567 = vunpack.c.l.b16 %v552
          %v568 = vunpack.c.l.b16 %v553
          %v569 = vpack.c.b16 %v568, %v567
          %v574 = vunpack.c.l.b16 %v554
          %v575 = vunpack.c.l.b16 %v555
          %v576 = vunpack.c.l.b16 %v556
          %v577 = vunpack.c.l.b16 %v557
          %v578 = vpack.c.b16 %v575, %v574
          %v579 = vpack.c.b16 %v577, %v576
          %vm582 = vcmask 261120
          %v584 = vsel %vm582, %v569, 0
          %586 = vmatprep.subr.bf16.mxu0 0
          %587 = vmatpush1.bf16.msra.mxu0 %v578
          %588 = vmatprep.subr.bf16.mxu0 0
          %589 = vmatpush1.bf16.msra.mxu0 %v579
          %590 = vmatprep.subr.bf16.mxu0 0
          %591 = vmatpush1.bf16.msra.mxu0 0
          %592 = vmatprep.subr.bf16.mxu0 0
          %593 = vmatpush1.bf16.msra.mxu0 0
          %594 = vmatprep.subr.bf16.mxu0 0
          %595 = vmatpush1.bf16.msra.mxu0 0
          %596 = vmatprep.subr.bf16.mxu0 0
          %597 = vmatpush1.bf16.msra.mxu0 0
          %598 = vmatprep.subr.bf16.mxu0 0
          %599 = vmatpush1.bf16.msra.mxu0 0
          %600 = vmatprep.subr.bf16.mxu0 0
          %601 = vmatpush1.bf16.msra.mxu0 0
          %602 = vmatprep.subr.bf16.mxu0 0
          %603 = vmatpush1.bf16.msra.mxu0 0
          %604 = vmatprep.subr.bf16.mxu0 0
          %605 = vmatpush1.bf16.msra.mxu0 0
          %606 = vmatprep.subr.bf16.mxu0 0
          %607 = vmatpush1.bf16.msra.mxu0 0
          %608 = vmatprep.subr.bf16.mxu0 0
          %609 = vmatpush1.bf16.msra.mxu0 0
          %610 = vmatprep.subr.bf16.mxu0 0
          %611 = vmatpush1.bf16.msra.mxu0 0
          %612 = vmatprep.subr.bf16.mxu0 0
          %613 = vmatpush1.bf16.msra.mxu0 0
          %614 = vmatprep.subr.bf16.mxu0 0
          %615 = vmatpush1.bf16.msra.mxu0 0
          %616 = vmatprep.subr.bf16.mxu0 0
          %617 = vmatpush1.bf16.msra.mxu0 0
          %618 = vmatprep.mubr.bf16.mxu0 0
          %619 = vmatmul.mubr.bf16.gmra.mrb[0].mxu0 %v584
          %v620 = vpop.f32.mrb[0].mxu0
          %v621 = vadd.f32 %v563, %v620
          %v622 = vpop.f32.mrb[0].mxu0
          %v623 = vpop.f32.mrb[0].mxu0
          %v624 = vadd.f32 %v563, %v623
          %v625 = vpop.f32.mrb[0].mxu0
          %626 = vdwg.mxu0
          %v627 = vpack.c.bf16 %v624, %v621
          %628 = vst.msk [vmem:[#allocation2] sm:$0xff] %vm582, %v627
          %630 = vrot.lane.b32.xlu0 %v627, 96
          %v631 = vpop.permute.xlu0 %630
          %633 = vst.msk [vmem:[#allocation3] sm:$0xff] %vm582, %v631
        $region92: #{tpu_custom_call.1} parent=71 // pred_fallthru
          _
        %v634 = vld [vmem:[%s539] sm:$0xf]
        %v635 = vld [vmem:[%s539 + $0x4] sm:$0xf]
        %v636 = vld [vmem:[%s2] sm:$0xf]
        %v637 = vld [vmem:[%s2 + $0x4] sm:$0xf]
        %v638 = vld [vmem:[%s2 + $0x8] sm:$0xf]
        %v639 = vld [vmem:[%s2 + $0xc] sm:$0xf]
        %v640 = vld [vmem:[%s3] sm:$0x1]
        %v642 = vlaneseq
        %v643 = vshrl.u32 %v642, 7
        %v644 = vsub.s32 0, %v643
        %v645 = vrot.slane %v640, %v644
        %v649 = vunpack.c.l.b16 %v634
        %v650 = vunpack.c.l.b16 %v635
        %v651 = vpack.c.b16 %v650, %v649
        %v656 = vunpack.c.l.b16 %v636
        %v657 = vunpack.c.l.b16 %v637
        %v658 = vunpack.c.l.b16 %v638
        %v659 = vunpack.c.l.b16 %v639
        %v660 = vpack.c.b16 %v657, %v656
        %v661 = vpack.c.b16 %v659, %v658
        %vm664 = vcmask 261120
        %v666 = vsel %vm664, %v651, 0
        %668 = vmatprep.subr.bf16.mxu0 0
        %669 = vmatpush1.bf16.msra.mxu0 %v660
        %670 = vmatprep.subr.bf16.mxu0 0
        %671 = vmatpush1.bf16.msra.mxu0 %v661
        %672 = vmatprep.subr.bf16.mxu0 0
        %673 = vmatpush1.bf16.msra.mxu0 0
        %674 = vmatprep.subr.bf16.mxu0 0
        %675 = vmatpush1.bf16.msra.mxu0 0
        %676 = vmatprep.subr.bf16.mxu0 0
        %677 = vmatpush1.bf16.msra.mxu0 0
        %678 = vmatprep.subr.bf16.mxu0 0
        %679 = vmatpush1.bf16.msra.mxu0 0
        %680 = vmatprep.subr.bf16.mxu0 0
        %681 = vmatpush1.bf16.msra.mxu0 0
        %682 = vmatprep.subr.bf16.mxu0 0
        %683 = vmatpush1.bf16.msra.mxu0 0
        %684 = vmatprep.subr.bf16.mxu0 0
        %685 = vmatpush1.bf16.msra.mxu0 0
        %686 = vmatprep.subr.bf16.mxu0 0
        %687 = vmatpush1.bf16.msra.mxu0 0
        %688 = vmatprep.subr.bf16.mxu0 0
        %689 = vmatpush1.bf16.msra.mxu0 0
        %690 = vmatprep.subr.bf16.mxu0 0
        %691 = vmatpush1.bf16.msra.mxu0 0
        %692 = vmatprep.subr.bf16.mxu0 0
        %693 = vmatpush1.bf16.msra.mxu0 0
        %694 = vmatprep.subr.bf16.mxu0 0
        %695 = vmatpush1.bf16.msra.mxu0 0
        %696 = vmatprep.subr.bf16.mxu0 0
        %697 = vmatpush1.bf16.msra.mxu0 0
        %698 = vmatprep.subr.bf16.mxu0 0
        %699 = vmatpush1.bf16.msra.mxu0 0
        %700 = vmatprep.mubr.bf16.mxu0 0
        %701 = vmatmul.mubr.bf16.gmra.mrb[0].mxu0 %v666
        %v702 = vpop.f32.mrb[0].mxu0
        %v703 = vadd.f32 %v645, %v702
        %v704 = vpop.f32.mrb[0].mxu0
        %v705 = vpop.f32.mrb[0].mxu0
        %v706 = vadd.f32 %v645, %v705
        %v707 = vpop.f32.mrb[0].mxu0
        %708 = vdwg.mxu0
        %v709 = vpack.c.bf16 %v706, %v703
        %v710 = vld [vmem:[#allocation2] sm:$0xff]
        %v711 = vld [vmem:[#allocation3] sm:$0xff]
        %vm712 = vcmask 64512
        %v714 = vsel %vm712, %v709, 0
        %v717 = vsel %vm712, %v710, 0
        %719 = vmatprep.subr.bf16.mxu0 0
        %720 = vmatpush1.bf16.xpose.msra.mxu0 %v717
        %721 = vmatprep.subr.bf16.mxu0 0
        %722 = vmatpush1.bf16.xpose.msra.mxu0 0
        %723 = vmatprep.subr.bf16.mxu0 0
        %724 = vmatpush1.bf16.xpose.msra.mxu0 0
        %725 = vmatprep.subr.bf16.mxu0 0
        %726 = vmatpush1.bf16.xpose.msra.mxu0 0
        %727 = vmatprep.subr.bf16.mxu0 0
        %728 = vmatpush1.bf16.xpose.msra.mxu0 0
        %729 = vmatprep.subr.bf16.mxu0 0
        %730 = vmatpush1.bf16.xpose.msra.mxu0 0
        %731 = vmatprep.subr.bf16.mxu0 0
        %732 = vmatpush1.bf16.xpose.msra.mxu0 0
        %733 = vmatprep.subr.bf16.mxu0 0
        %734 = vmatpush1.bf16.xpose.msra.mxu0 0
        %735 = vmatprep.subr.bf16.mxu0 0
        %736 = vmatpush1.bf16.xpose.msra.mxu0 0
        %737 = vmatprep.subr.bf16.mxu0 0
        %738 = vmatpush1.bf16.xpose.msra.mxu0 0
        %739 = vmatprep.subr.bf16.mxu0 0
        %740 = vmatpush1.bf16.xpose.msra.mxu0 0
        %741 = vmatprep.subr.bf16.mxu0 0
        %742 = vmatpush1.bf16.xpose.msra.mxu0 0
        %743 = vmatprep.subr.bf16.mxu0 0
        %744 = vmatpush1.bf16.xpose.msra.mxu0 0
        %745 = vmatprep.subr.bf16.mxu0 0
        %746 = vmatpush1.bf16.xpose.msra.mxu0 0
        %747 = vmatprep.subr.bf16.mxu0 0
        %748 = vmatpush1.bf16.xpose.msra.mxu0 0
        %749 = vmatprep.subr.bf16.mxu0 0
        %750 = vmatpush1.bf16.xpose.msra.mxu0 0
        %751 = vmatprep.mubr.bf16.mxu0 0
        %752 = vmatmul.mubr.bf16.gmra.mrb[0].mxu0 %v714
        %v753 = vpop.f32.mrb[0].mxu0
        %v754 = vadd.f32 0.0, %v753
        %v755 = vpop.f32.mrb[0].mxu0
        %v756 = vpop.f32.mrb[0].mxu0
        %v757 = vadd.f32 0.0, %v756
        %v758 = vpop.f32.mrb[0].mxu0
        %759 = vdwg.mxu0
        %vm760 = vcmask 130048
        %v761 = vsel %vm760, %v754, -inf
        %762 = vmax.xlane.f32.xlu0 %v761
        %v763 = vpop.xlane.xlu0 %762
        %v764 = vsel %vm760, %v757, -inf
        %765 = vmax.xlane.f32.xlu0 %v764
        %v766 = vpop.xlane.xlu0 %765
        %v767 = vsub.f32 %v754, %v763
        %v768 = vsub.f32 %v757, %v766
        %v769 = vmul.f32 %v767, 1.442695
        %v770 = vpow.pop %v769
        %v771 = vmul.f32 %v768, 1.442695
        %v772 = vpow.pop %v771
        %v773 = vsel %vm760, %v770, 0.0
        %774 = vadd.xlane.f32.xlu0 %v773
        %v775 = vpop.xlane.xlu0 %774
        %v776 = vsel %vm760, %v772, 0.0
        %777 = vadd.xlane.f32.xlu0 %v776
        %v778 = vpop.xlane.xlu0 %777
        %v779 = vpack.c.bf16 %v772, %v770
        %v781 = vsel %vm760, %v779, 0
        %783 = vmatprep.subr.bf16.mxu0 0
        %784 = vmatpush1.bf16.msra.mxu0 %v711
        %785 = vmatprep.subr.bf16.mxu0 0
        %786 = vmatpush1.bf16.msra.mxu0 0
        %787 = vmatprep.subr.bf16.mxu0 0
        %788 = vmatpush1.bf16.msra.mxu0 0
        %789 = vmatprep.subr.bf16.mxu0 0
        %790 = vmatpush1.bf16.msra.mxu0 0
        %791 = vmatprep.subr.bf16.mxu0 0
        %792 = vmatpush1.bf16.msra.mxu0 0
        %793 = vmatprep.subr.bf16.mxu0 0
        %794 = vmatpush1.bf16.msra.mxu0 0
        %795 = vmatprep.subr.bf16.mxu0 0
        %796 = vmatpush1.bf16.msra.mxu0 0
        %797 = vmatprep.subr.bf16.mxu0 0
        %798 = vmatpush1.bf16.msra.mxu0 0
        %799 = vmatprep.subr.bf16.mxu0 0
        %800 = vmatpush1.bf16.msra.mxu0 0
        %801 = vmatprep.subr.bf16.mxu0 0
        %802 = vmatpush1.bf16.msra.mxu0 0
        %803 = vmatprep.subr.bf16.mxu0 0
        %804 = vmatpush1.bf16.msra.mxu0 0
        %805 = vmatprep.subr.bf16.mxu0 0
        %806 = vmatpush1.bf16.msra.mxu0 0
        %807 = vmatprep.subr.bf16.mxu0 0
        %808 = vmatpush1.bf16.msra.mxu0 0
        %809 = vmatprep.subr.bf16.mxu0 0
        %810 = vmatpush1.bf16.msra.mxu0 0
        %811 = vmatprep.subr.bf16.mxu0 0
        %812 = vmatpush1.bf16.msra.mxu0 0
        %813 = vmatprep.subr.bf16.mxu0 0
        %814 = vmatpush1.bf16.msra.mxu0 0
        %815 = vmatprep.mubr.bf16.mxu0 0
        %816 = vmatmul.mubr.bf16.gmra.mrb[0].mxu0 %v781
        %v817 = vpop.f32.mrb[0].mxu0
        %v818 = vadd.f32 0.0, %v817
        %v819 = vpop.f32.mrb[0].mxu0
        %v820 = vpop.f32.mrb[0].mxu0
        %v821 = vadd.f32 0.0, %v820
        %v822 = vpop.f32.mrb[0].mxu0
        %823 = vdwg.mxu0
        %v824 = vrcp.pop %v775
        %v825 = vrcp.pop %v778
        %v826 = vmul.f32 %v818, %v824
        %v827 = vmul.f32 %v821, %v825
        %829 = vrot.lane.b32.xlu0 %v709, 120
        %v830 = vpop.permute.xlu0 %829
        %832 = vrot.lane.b32.xlu0 %v710, 120
        %v833 = vpop.permute.xlu0 %832
        %v835 = vsel %vm712, %v830, 0
        %v838 = vsel %vm712, %v833, 0
        %840 = vmatprep.subr.bf16.mxu0 0
        %841 = vmatpush1.bf16.xpose.msra.mxu0 %v838
        %842 = vmatprep.subr.bf16.mxu0 0
        %843 = vmatpush1.bf16.xpose.msra.mxu0 0
        %844 = vmatprep.subr.bf16.mxu0 0
        %845 = vmatpush1.bf16.xpose.msra.mxu0 0
        %846 = vmatprep.subr.bf16.mxu0 0
        %847 = vmatpush1.bf16.xpose.msra.mxu0 0
        %848 = vmatprep.subr.bf16.mxu0 0
        %849 = vmatpush1.bf16.xpose.msra.mxu0 0
        %850 = vmatprep.subr.bf16.mxu0 0
        %851 = vmatpush1.bf16.xpose.msra.mxu0 0
        %852 = vmatprep.subr.bf16.mxu0 0
        %853 = vmatpush1.bf16.xpose.msra.mxu0 0
        %854 = vmatprep.subr.bf16.mxu0 0
        %855 = vmatpush1.bf16.xpose.msra.mxu0 0
        %856 = vmatprep.subr.bf16.mxu0 0
        %857 = vmatpush1.bf16.xpose.msra.mxu0 0
        %858 = vmatprep.subr.bf16.mxu0 0
        %859 = vmatpush1.bf16.xpose.msra.mxu0 0
        %860 = vmatprep.subr.bf16.mxu0 0
        %861 = vmatpush1.bf16.xpose.msra.mxu0 0
        %862 = vmatprep.subr.bf16.mxu0 0
        %863 = vmatpush1.bf16.xpose.msra.mxu0 0
        %864 = vmatprep.subr.bf16.mxu0 0
        %865 = vmatpush1.bf16.xpose.msra.mxu0 0
        %866 = vmatprep.subr.bf16.mxu0 0
        %867 = vmatpush1.bf16.xpose.msra.mxu0 0
        %868 = vmatprep.subr.bf16.mxu0 0
        %869 = vmatpush1.bf16.xpose.msra.mxu0 0
        %870 = vmatprep.subr.bf16.mxu0 0
        %871 = vmatpush1.bf16.xpose.msra.mxu0 0
        %872 = vmatprep.mubr.bf16.mxu0 0
        %873 = vmatmul.mubr.bf16.gmra.mrb[0].mxu0 %v835
        %v874 = vpop.f32.mrb[0].mxu0
        %v875 = vadd.f32 0.0, %v874
        %v876 = vpop.f32.mrb[0].mxu0
        %v877 = vpop.f32.mrb[0].mxu0
        %v878 = vadd.f32 0.0, %v877
        %v879 = vpop.f32.mrb[0].mxu0
        %880 = vdwg.mxu0
        %v881 = vsel %vm760, %v875, -inf
        %882 = vmax.xlane.f32.xlu0 %v881
        %v883 = vpop.xlane.xlu0 %882
        %v884 = vsel %vm760, %v878, -inf
        %885 = vmax.xlane.f32.xlu0 %v884
        %v886 = vpop.xlane.xlu0 %885
        %v887 = vsub.f32 %v875, %v883
        %v888 = vsub.f32 %v878, %v886
        %v889 = vmul.f32 %v887, 1.442695
        %v890 = vpow.pop %v889
        %v891 = vmul.f32 %v888, 1.442695
        %v892 = vpow.pop %v891
        %v893 = vsel %vm760, %v890, 0.0
        %894 = vadd.xlane.f32.xlu0 %v893
        %v895 = vpop.xlane.xlu0 %894
        %v896 = vsel %vm760, %v892, 0.0
        %897 = vadd.xlane.f32.xlu0 %v896
        %v898 = vpop.xlane.xlu0 %897
        %v899 = vpack.c.bf16 %v892, %v890
        %901 = vrot.lane.b32.xlu0 %v711, 120
        %v902 = vpop.permute.xlu0 %901
        %v905 = vsel %vm760, %v899, 0
        %907 = vmatprep.subr.bf16.mxu0 0
        %908 = vmatpush1.bf16.msra.mxu0 %v902
        %909 = vmatprep.subr.bf16.mxu0 0
        %910 = vmatpush1.bf16.msra.mxu0 0
        %911 = vmatprep.subr.bf16.mxu0 0
        %912 = vmatpush1.bf16.msra.mxu0 0
        %913 = vmatprep.subr.bf16.mxu0 0
        %914 = vmatpush1.bf16.msra.mxu0 0
        %915 = vmatprep.subr.bf16.mxu0 0
        %916 = vmatpush1.bf16.msra.mxu0 0
        %917 = vmatprep.subr.bf16.mxu0 0
        %918 = vmatpush1.bf16.msra.mxu0 0
        %919 = vmatprep.subr.bf16.mxu0 0
        %920 = vmatpush1.bf16.msra.mxu0 0
        %921 = vmatprep.subr.bf16.mxu0 0
        %922 = vmatpush1.bf16.msra.mxu0 0
        %923 = vmatprep.subr.bf16.mxu0 0
        %924 = vmatpush1.bf16.msra.mxu0 0
        %925 = vmatprep.subr.bf16.mxu0 0
        %926 = vmatpush1.bf16.msra.mxu0 0
        %927 = vmatprep.subr.bf16.mxu0 0
        %928 = vmatpush1.bf16.msra.mxu0 0
        %929 = vmatprep.subr.bf16.mxu0 0
        %930 = vmatpush1.bf16.msra.mxu0 0
        %931 = vmatprep.subr.bf16.mxu0 0
        %932 = vmatpush1.bf16.msra.mxu0 0
        %933 = vmatprep.subr.bf16.mxu0 0
        %934 = vmatpush1.bf16.msra.mxu0 0
        %935 = vmatprep.subr.bf16.mxu0 0
        %936 = vmatpush1.bf16.msra.mxu0 0
        %937 = vmatprep.subr.bf16.mxu0 0
        %938 = vmatpush1.bf16.msra.mxu0 0
        %939 = vmatprep.mubr.bf16.mxu0 0
        %940 = vmatmul.mubr.bf16.gmra.mrb[0].mxu0 %v905
        %v941 = vpop.f32.mrb[0].mxu0
        %v942 = vadd.f32 0.0, %v941
        %v943 = vpop.f32.mrb[0].mxu0
        %v944 = vpop.f32.mrb[0].mxu0
        %v945 = vadd.f32 0.0, %v944
        %v946 = vpop.f32.mrb[0].mxu0
        %947 = vdwg.mxu0
        %v948 = vrcp.pop %v895
        %v949 = vrcp.pop %v898
        %v950 = vmul.f32 %v942, %v948
        %v951 = vmul.f32 %v945, %v949
        %952 = vrot.lane.b32.xlu0 %v709, 112
        %v953 = vpop.permute.xlu0 %952
        %954 = vrot.lane.b32.xlu0 %v710, 112
        %v955 = vpop.permute.xlu0 %954
        %v957 = vsel %vm712, %v953, 0
        %v960 = vsel %vm712, %v955, 0
        %962 = vmatprep.subr.bf16.mxu0 0
        %963 = vmatpush1.bf16.xpose.msra.mxu0 %v960
        %964 = vmatprep.subr.bf16.mxu0 0
        %965 = vmatpush1.bf16.xpose.msra.mxu0 0
        %966 = vmatprep.subr.bf16.mxu0 0
        %967 = vmatpush1.bf16.xpose.msra.mxu0 0
        %968 = vmatprep.subr.bf16.mxu0 0
        %969 = vmatpush1.bf16.xpose.msra.mxu0 0
        %970 = vmatprep.subr.bf16.mxu0 0
        %971 = vmatpush1.bf16.xpose.msra.mxu0 0
        %972 = vmatprep.subr.bf16.mxu0 0
        %973 = vmatpush1.bf16.xpose.msra.mxu0 0
        %974 = vmatprep.subr.bf16.mxu0 0
        %975 = vmatpush1.bf16.xpose.msra.mxu0 0
        %976 = vmatprep.subr.bf16.mxu0 0
        %977 = vmatpush1.bf16.xpose.msra.mxu0 0
        %978 = vmatprep.subr.bf16.mxu0 0
        %979 = vmatpush1.bf16.xpose.msra.mxu0 0
        %980 = vmatprep.subr.bf16.mxu0 0
        %981 = vmatpush1.bf16.xpose.msra.mxu0 0
        %982 = vmatprep.subr.bf16.mxu0 0
        %983 = vmatpush1.bf16.xpose.msra.mxu0 0
        %984 = vmatprep.subr.bf16.mxu0 0
        %985 = vmatpush1.bf16.xpose.msra.mxu0 0
        %986 = vmatprep.subr.bf16.mxu0 0
        %987 = vmatpush1.bf16.xpose.msra.mxu0 0
        %988 = vmatprep.subr.bf16.mxu0 0
        %989 = vmatpush1.bf16.xpose.msra.mxu0 0
        %990 = vmatprep.subr.bf16.mxu0 0
        %991 = vmatpush1.bf16.xpose.msra.mxu0 0
        %992 = vmatprep.subr.bf16.mxu0 0
        %993 = vmatpush1.bf16.xpose.msra.mxu0 0
        %994 = vmatprep.mubr.bf16.mxu0 0
        %995 = vmatmul.mubr.bf16.gmra.mrb[0].mxu0 %v957
        %v996 = vpop.f32.mrb[0].mxu0
        %v997 = vadd.f32 0.0, %v996
        %v998 = vpop.f32.mrb[0].mxu0
        %v999 = vpop.f32.mrb[0].mxu0
        %v1000 = vadd.f32 0.0, %v999
        %v1001 = vpop.f32.mrb[0].mxu0
        %1002 = vdwg.mxu0
        %v1003 = vsel %vm760, %v997, -inf
        %1004 = vmax.xlane.f32.xlu0 %v1003
        %v1005 = vpop.xlane.xlu0 %1004
        %v1006 = vsel %vm760, %v1000, -inf
        %1007 = vmax.xlane.f32.xlu0 %v1006
        %v1008 = vpop.xlane.xlu0 %1007
        %v1009 = vsub.f32 %v997, %v1005
        %v1010 = vsub.f32 %v1000, %v1008
        %v1011 = vmul.f32 %v1009, 1.442695
        %v1012 = vpow.pop %v1011
        %v1013 = vmul.f32 %v1010, 1.442695
        %v1014 = vpow.pop %v1013
        %v1015 = vsel %vm760, %v1012, 0.0
        %1016 = vadd.xlane.f32.xlu0 %v1015
        %v1017 = vpop.xlane.xlu0 %1016
        %v1018 = vsel %vm760, %v1014, 0.0
        %1019 = vadd.xlane.f32.xlu0 %v1018
        %v1020 = vpop.xlane.xlu0 %1019
        %v1021 = vpack.c.bf16 %v1014, %v1012
        %1022 = vrot.lane.b32.xlu0 %v711, 112
        %v1023 = vpop.permute.xlu0 %1022
        %v1026 = vsel %vm760, %v1021, 0
        %1028 = vmatprep.subr.bf16.mxu0 0
        %1029 = vmatpush1.bf16.msra.mxu0 %v1023
        %1030 = vmatprep.subr.bf16.mxu0 0
        %1031 = vmatpush1.bf16.msra.mxu0 0
        %1032 = vmatprep.subr.bf16.mxu0 0
        %1033 = vmatpush1.bf16.msra.mxu0 0
        %1034 = vmatprep.subr.bf16.mxu0 0
        %1035 = vmatpush1.bf16.msra.mxu0 0
        %1036 = vmatprep.subr.bf16.mxu0 0
        %1037 = vmatpush1.bf16.msra.mxu0 0
        %1038 = vmatprep.subr.bf16.mxu0 0
        %1039 = vmatpush1.bf16.msra.mxu0 0
        %1040 = vmatprep.subr.bf16.mxu0 0
        %1041 = vmatpush1.bf16.msra.mxu0 0
        %1042 = vmatprep.subr.bf16.mxu0 0
        %1043 = vmatpush1.bf16.msra.mxu0 0
        %1044 = vmatprep.subr.bf16.mxu0 0
        %1045 = vmatpush1.bf16.msra.mxu0 0
        %1046 = vmatprep.subr.bf16.mxu0 0
        %1047 = vmatpush1.bf16.msra.mxu0 0
        %1048 = vmatprep.subr.bf16.mxu0 0
        %1049 = vmatpush1.bf16.msra.mxu0 0
        %1050 = vmatprep.subr.bf16.mxu0 0
        %1051 = vmatpush1.bf16.msra.mxu0 0
        %1052 = vmatprep.subr.bf16.mxu0 0
        %1053 = vmatpush1.bf16.msra.mxu0 0
        %1054 = vmatprep.subr.bf16.mxu0 0
        %1055 = vmatpush1.bf16.msra.mxu0 0
        %1056 = vmatprep.subr.bf16.mxu0 0
        %1057 = vmatpush1.bf16.msra.mxu0 0
        %1058 = vmatprep.subr.bf16.mxu0 0
        %1059 = vmatpush1.bf16.msra.mxu0 0
        %1060 = vmatprep.mubr.bf16.mxu0 0
        %1061 = vmatmul.mubr.bf16.gmra.mrb[0].mxu0 %v1026
        %v1062 = vpop.f32.mrb[0].mxu0
        %v1063 = vadd.f32 0.0, %v1062
        %v1064 = vpop.f32.mrb[0].mxu0
        %v1065 = vpop.f32.mrb[0].mxu0
        %v1066 = vadd.f32 0.0, %v1065
        %v1067 = vpop.f32.mrb[0].mxu0
        %1068 = vdwg.mxu0
        %v1069 = vrcp.pop %v1017
        %v1070 = vrcp.pop %v1020
        %v1071 = vmul.f32 %v1063, %v1069
        %v1072 = vmul.f32 %v1066, %v1070
        %1073 = vrot.lane.b32.xlu0 %v709, 104
        %v1074 = vpop.permute.xlu0 %1073
        %1075 = vrot.lane.b32.xlu0 %v710, 104
        %v1076 = vpop.permute.xlu0 %1075
        %v1078 = vsel %vm712, %v1074, 0
        %v1081 = vsel %vm712, %v1076, 0
        %1083 = vmatprep.subr.bf16.mxu0 0
        %1084 = vmatpush1.bf16.xpose.msra.mxu0 %v1081
        %1085 = vmatprep.subr.bf16.mxu0 0
        %1086 = vmatpush1.bf16.xpose.msra.mxu0 0
        %1087 = vmatprep.subr.bf16.mxu0 0
        %1088 = vmatpush1.bf16.xpose.msra.mxu0 0
        %1089 = vmatprep.subr.bf16.mxu0 0
        %1090 = vmatpush1.bf16.xpose.msra.mxu0 0
        %1091 = vmatprep.subr.bf16.mxu0 0
        %1092 = vmatpush1.bf16.xpose.msra.mxu0 0
        %1093 = vmatprep.subr.bf16.mxu0 0
        %1094 = vmatpush1.bf16.xpose.msra.mxu0 0
        %1095 = vmatprep.subr.bf16.mxu0 0
        %1096 = vmatpush1.bf16.xpose.msra.mxu0 0
        %1097 = vmatprep.subr.bf16.mxu0 0
        %1098 = vmatpush1.bf16.xpose.msra.mxu0 0
        %1099 = vmatprep.subr.bf16.mxu0 0
        %1100 = vmatpush1.bf16.xpose.msra.mxu0 0
        %1101 = vmatprep.subr.bf16.mxu0 0
        %1102 = vmatpush1.bf16.xpose.msra.mxu0 0
        %1103 = vmatprep.subr.bf16.mxu0 0
        %1104 = vmatpush1.bf16.xpose.msra.mxu0 0
        %1105 = vmatprep.subr.bf16.mxu0 0
        %1106 = vmatpush1.bf16.xpose.msra.mxu0 0
        %1107 = vmatprep.subr.bf16.mxu0 0
        %1108 = vmatpush1.bf16.xpose.msra.mxu0 0
        %1109 = vmatprep.subr.bf16.mxu0 0
        %1110 = vmatpush1.bf16.xpose.msra.mxu0 0
        %1111 = vmatprep.subr.bf16.mxu0 0
        %1112 = vmatpush1.bf16.xpose.msra.mxu0 0
        %1113 = vmatprep.subr.bf16.mxu0 0
        %1114 = vmatpush1.bf16.xpose.msra.mxu0 0
        %1115 = vmatprep.mubr.bf16.mxu0 0
        %1116 = vmatmul.mubr.bf16.gmra.mrb[0].mxu0 %v1078
        %v1117 = vpop.f32.mrb[0].mxu0
        %v1118 = vadd.f32 0.0, %v1117
        %v1119 = vpop.f32.mrb[0].mxu0
        %v1120 = vpop.f32.mrb[0].mxu0
        %v1121 = vadd.f32 0.0, %v1120
        %v1122 = vpop.f32.mrb[0].mxu0
        %1123 = vdwg.mxu0
        %v1124 = vsel %vm760, %v1118, -inf
        %1125 = vmax.xlane.f32.xlu0 %v1124
        %v1126 = vpop.xlane.xlu0 %1125
        %v1127 = vsel %vm760, %v1121, -inf
        %1128 = vmax.xlane.f32.xlu0 %v1127
        %v1129 = vpop.xlane.xlu0 %1128
        %v1130 = vsub.f32 %v1118, %v1126
        %v1131 = vsub.f32 %v1121, %v1129
        %v1132 = vmul.f32 %v1130, 1.442695
        %v1133 = vpow.pop %v1132
        %v1134 = vmul.f32 %v1131, 1.442695
        %v1135 = vpow.pop %v1134
        %v1136 = vsel %vm760, %v1133, 0.0
        %1137 = vadd.xlane.f32.xlu0 %v1136
        %v1138 = vpop.xlane.xlu0 %1137
        %v1139 = vsel %vm760, %v1135, 0.0
        %1140 = vadd.xlane.f32.xlu0 %v1139
        %v1141 = vpop.xlane.xlu0 %1140
        %v1142 = vpack.c.bf16 %v1135, %v1133
        %1143 = vrot.lane.b32.xlu0 %v711, 104
        %v1144 = vpop.permute.xlu0 %1143
        %v1147 = vsel %vm760, %v1142, 0
        %1149 = vmatprep.subr.bf16.mxu0 0
        %1150 = vmatpush1.bf16.msra.mxu0 %v1144
        %1151 = vmatprep.subr.bf16.mxu0 0
        %1152 = vmatpush1.bf16.msra.mxu0 0
        %1153 = vmatprep.subr.bf16.mxu0 0
        %1154 = vmatpush1.bf16.msra.mxu0 0
        %1155 = vmatprep.subr.bf16.mxu0 0
        %1156 = vmatpush1.bf16.msra.mxu0 0
        %1157 = vmatprep.subr.bf16.mxu0 0
        %1158 = vmatpush1.bf16.msra.mxu0 0
        %1159 = vmatprep.subr.bf16.mxu0 0
        %1160 = vmatpush1.bf16.msra.mxu0 0
        %1161 = vmatprep.subr.bf16.mxu0 0
        %1162 = vmatpush1.bf16.msra.mxu0 0
        %1163 = vmatprep.subr.bf16.mxu0 0
        %1164 = vmatpush1.bf16.msra.mxu0 0
        %1165 = vmatprep.subr.bf16.mxu0 0
        %1166 = vmatpush1.bf16.msra.mxu0 0
        %1167 = vmatprep.subr.bf16.mxu0 0
        %1168 = vmatpush1.bf16.msra.mxu0 0
        %1169 = vmatprep.subr.bf16.mxu0 0
        %1170 = vmatpush1.bf16.msra.mxu0 0
        %1171 = vmatprep.subr.bf16.mxu0 0
        %1172 = vmatpush1.bf16.msra.mxu0 0
        %1173 = vmatprep.subr.bf16.mxu0 0
        %1174 = vmatpush1.bf16.msra.mxu0 0
        %1175 = vmatprep.subr.bf16.mxu0 0
        %1176 = vmatpush1.bf16.msra.mxu0 0
        %1177 = vmatprep.subr.bf16.mxu0 0
        %1178 = vmatpush1.bf16.msra.mxu0 0
        %1179 = vmatprep.subr.bf16.mxu0 0
        %1180 = vmatpush1.bf16.msra.mxu0 0
        %1181 = vmatprep.mubr.bf16.mxu0 0
        %1182 = vmatmul.mubr.bf16.gmra.mrb[0].mxu0 %v1147
        %v1183 = vpop.f32.mrb[0].mxu0
        %v1184 = vadd.f32 0.0, %v1183
        %v1185 = vpop.f32.mrb[0].mxu0
        %v1186 = vpop.f32.mrb[0].mxu0
        %v1187 = vadd.f32 0.0, %v1186
        %v1188 = vpop.f32.mrb[0].mxu0
        %1189 = vdwg.mxu0
        %v1190 = vrcp.pop %v1138
        %v1191 = vrcp.pop %v1141
        %v1192 = vmul.f32 %v1184, %v1190
        %v1193 = vmul.f32 %v1187, %v1191
        %1196 = vrot.lane.b32.xlu0 %v950, 8
        %v1197 = vpop.permute.xlu0 %1196
        %1198 = vrot.lane.b32.xlu0 %v951, 8
        %v1199 = vpop.permute.xlu0 %1198
        %1204 = vrot.lane.b32.xlu0 %v1071, 16
        %v1205 = vpop.permute.xlu0 %1204
        %1206 = vrot.lane.b32.xlu0 %v1072, 16
        %v1207 = vpop.permute.xlu0 %1206
        %1212 = vrot.lane.b32.xlu0 %v1192, 24
        %v1213 = vpop.permute.xlu0 %1212
        %1214 = vrot.lane.b32.xlu0 %v1193, 24
        %v1215 = vpop.permute.xlu0 %1214
        %v1218 = vsel %vm712, %v826, %v1197
        %v1219 = vsel %vm712, %v827, %v1199
        %v1220 = vsel %vm760, %v1218, %v1205
        %v1221 = vsel %vm760, %v1219, %v1207
        %vm1222 = vcmask 195584
        %v1223 = vsel %vm1222, %v1220, %v1213
        %v1224 = vsel %vm1222, %v1221, %v1215
        %v1225 = vpack.c.bf16 %v1224, %v1223
        %v1226 = vld [vmem:[#allocation7] sm:$0xf]
        %v1227 = vld [vmem:[#allocation7 + $0x4] sm:$0xf]
        %v1228 = vld [vmem:[#allocation7 + $0x8] sm:$0xf]
        %v1229 = vld [vmem:[#allocation7 + $0xc] sm:$0xf]
        %v1230 = vld [vmem:[#allocation9] sm:$0x1]
        %v1232 = vlaneseq
        %v1233 = vshrl.u32 %v1232, 7
        %v1234 = vsub.s32 0, %v1233
        %v1235 = vrot.slane %v1230, %v1234
        %v1241 = vunpack.c.l.b16 %v1226
        %v1242 = vunpack.c.l.b16 %v1227
        %v1243 = vunpack.c.l.b16 %v1228
        %v1244 = vunpack.c.l.b16 %v1229
        %v1245 = vpack.c.b16 %v1242, %v1241
        %v1246 = vpack.c.b16 %v1244, %v1243
        %v1250 = vsel %vm664, %v1225, 0
        %1252 = vmatprep.subr.bf16.mxu0 0
        %1253 = vmatpush1.bf16.msra.mxu0 %v1245
        %1254 = vmatprep.subr.bf16.mxu0 0
        %1255 = vmatpush1.bf16.msra.mxu0 %v1246
        %1256 = vmatprep.subr.bf16.mxu0 0
        %1257 = vmatpush1.bf16.msra.mxu0 0
        %1258 = vmatprep.subr.bf16.mxu0 0
        %1259 = vmatpush1.bf16.msra.mxu0 0
        %1260 = vmatprep.subr.bf16.mxu0 0
        %1261 = vmatpush1.bf16.msra.mxu0 0
        %1262 = vmatprep.subr.bf16.mxu0 0
        %1263 = vmatpush1.bf16.msra.mxu0 0
        %1264 = vmatprep.subr.bf16.mxu0 0
        %1265 = vmatpush1.bf16.msra.mxu0 0
        %1266 = vmatprep.subr.bf16.mxu0 0
        %1267 = vmatpush1.bf16.msra.mxu0 0
        %1268 = vmatprep.subr.bf16.mxu0 0
        %1269 = vmatpush1.bf16.msra.mxu0 0
        %1270 = vmatprep.subr.bf16.mxu0 0
        %1271 = vmatpush1.bf16.msra.mxu0 0
        %1272 = vmatprep.subr.bf16.mxu0 0
        %1273 = vmatpush1.bf16.msra.mxu0 0
        %1274 = vmatprep.subr.bf16.mxu0 0
        %1275 = vmatpush1.bf16.msra.mxu0 0
        %1276 = vmatprep.subr.bf16.mxu0 0
        %1277 = vmatpush1.bf16.msra.mxu0 0
        %1278 = vmatprep.subr.bf16.mxu0 0
        %1279 = vmatpush1.bf16.msra.mxu0 0
        %1280 = vmatprep.subr.bf16.mxu0 0
        %1281 = vmatpush1.bf16.msra.mxu0 0
        %1282 = vmatprep.subr.bf16.mxu0 0
        %1283 = vmatpush1.bf16.msra.mxu0 0
        %1284 = vmatprep.mubr.bf16.mxu0 0
        %1285 = vmatmul.mubr.bf16.gmra.mrb[0].mxu0 %v1250
        %v1286 = vpop.f32.mrb[0].mxu0
        %v1287 = vadd.f32 %v1235, %v1286
        %v1288 = vpop.f32.mrb[0].mxu0
        %v1289 = vpop.f32.mrb[0].mxu0
        %v1290 = vadd.f32 %v1235, %v1289
        %v1291 = vpop.f32.mrb[0].mxu0
        %1292 = vdwg.mxu0
        %v1293 = vld [vmem:[#allocation10] sm:$0xf]
        %v1294 = vld [vmem:[#allocation10 + $0x4] sm:$0xf]
        %v1295 = vld [vmem:[#allocation10 + $0x8] sm:$0xf]
        %v1296 = vld [vmem:[#allocation10 + $0xc] sm:$0xf]
        %v1297 = vpack.c.bf16 %v1290, %v1287
        %v1298 = vld [vmem:[%s9] sm:$0xf]
        %v1299 = vld [vmem:[%s9 + $0x4] sm:$0xf]
        %v1300 = vld [vmem:[%s9 + $0x8] sm:$0xf]
        %v1301 = vld [vmem:[%s9 + $0xc] sm:$0xf]
        %v1306 = vunpack.c.l.b16 %v1298
        %v1307 = vunpack.c.l.b16 %v1299
        %v1308 = vunpack.c.l.b16 %v1300
        %v1309 = vunpack.c.l.b16 %v1301
        %v1310 = vpack.c.b16 %v1307, %v1306
        %v1311 = vpack.c.b16 %v1309, %v1308
        %v1315 = vsel %vm664, %v1297, 0
        %1317 = vmatprep.subr.bf16.mxu0 0
        %1318 = vmatpush1.bf16.msra.mxu0 %v1310
        %1319 = vmatprep.subr.bf16.mxu0 0
        %1320 = vmatpush1.bf16.msra.mxu0 %v1311
        %1321 = vmatprep.subr.bf16.mxu0 0
        %1322 = vmatpush1.bf16.msra.mxu0 0
        %1323 = vmatprep.subr.bf16.mxu0 0
        %1324 = vmatpush1.bf16.msra.mxu0 0
        %1325 = vmatprep.subr.bf16.mxu0 0
        %1326 = vmatpush1.bf16.msra.mxu0 0
        %1327 = vmatprep.subr.bf16.mxu0 0
        %1328 = vmatpush1.bf16.msra.mxu0 0
        %1329 = vmatprep.subr.bf16.mxu0 0
        %1330 = vmatpush1.bf16.msra.mxu0 0
        %1331 = vmatprep.subr.bf16.mxu0 0
        %1332 = vmatpush1.bf16.msra.mxu0 0
        %1333 = vmatprep.subr.bf16.mxu0 0
        %1334 = vmatpush1.bf16.msra.mxu0 0
        %1335 = vmatprep.subr.bf16.mxu0 0
        %1336 = vmatpush1.bf16.msra.mxu0 0
        %1337 = vmatprep.subr.bf16.mxu0 0
        %1338 = vmatpush1.bf16.msra.mxu0 0
        %1339 = vmatprep.subr.bf16.mxu0 0
        %1340 = vmatpush1.bf16.msra.mxu0 0
        %1341 = vmatprep.subr.bf16.mxu0 0
        %1342 = vmatpush1.bf16.msra.mxu0 0
        %1343 = vmatprep.subr.bf16.mxu0 0
        %1344 = vmatpush1.bf16.msra.mxu0 0
        %1345 = vmatprep.subr.bf16.mxu0 0
        %1346 = vmatpush1.bf16.msra.mxu0 0
        %1347 = vmatprep.subr.bf16.mxu0 0
        %1348 = vmatpush1.bf16.msra.mxu0 0
        %1349 = vmatprep.mubr.bf16.mxu0 0
        %1350 = vmatmul.mubr.bf16.gmra.mrb[0].mxu0 %v1315
        %v1351 = vpop.f32.mrb[0].mxu0
        %v1352 = vadd.f32 0.0, %v1351
        %v1353 = vpop.f32.mrb[0].mxu0
        %v1354 = vpop.f32.mrb[0].mxu0
        %v1355 = vadd.f32 0.0, %v1354
        %v1356 = vpop.f32.mrb[0].mxu0
        %1357 = vdwg.mxu0
        %v1362 = vunpack.c.l.b16 %v1293
        %v1363 = vunpack.c.l.b16 %v1294
        %v1364 = vunpack.c.l.b16 %v1295
        %v1365 = vunpack.c.l.b16 %v1296
        %v1366 = vpack.c.b16 %v1363, %v1362
        %v1367 = vpack.c.b16 %v1365, %v1364
        %1370 = vmatprep.subr.bf16.mxu0 0
        %1371 = vmatpush1.bf16.msra.mxu0 %v1366
        %1372 = vmatprep.subr.bf16.mxu0 0
        %1373 = vmatpush1.bf16.msra.mxu0 %v1367
        %1374 = vmatprep.subr.bf16.mxu0 0
        %1375 = vmatpush1.bf16.msra.mxu0 0
        %1376 = vmatprep.subr.bf16.mxu0 0
        %1377 = vmatpush1.bf16.msra.mxu0 0
        %1378 = vmatprep.subr.bf16.mxu0 0
        %1379 = vmatpush1.bf16.msra.mxu0 0
        %1380 = vmatprep.subr.bf16.mxu0 0
        %1381 = vmatpush1.bf16.msra.mxu0 0
        %1382 = vmatprep.subr.bf16.mxu0 0
        %1383 = vmatpush1.bf16.msra.mxu0 0
        %1384 = vmatprep.subr.bf16.mxu0 0
        %1385 = vmatpush1.bf16.msra.mxu0 0
        %1386 = vmatprep.subr.bf16.mxu0 0
        %1387 = vmatpush1.bf16.msra.mxu0 0
        %1388 = vmatprep.subr.bf16.mxu0 0
        %1389 = vmatpush1.bf16.msra.mxu0 0
        %1390 = vmatprep.subr.bf16.mxu0 0
        %1391 = vmatpush1.bf16.msra.mxu0 0
        %1392 = vmatprep.subr.bf16.mxu0 0
        %1393 = vmatpush1.bf16.msra.mxu0 0
        %1394 = vmatprep.subr.bf16.mxu0 0
        %1395 = vmatpush1.bf16.msra.mxu0 0
        %1396 = vmatprep.subr.bf16.mxu0 0
        %1397 = vmatpush1.bf16.msra.mxu0 0
        %1398 = vmatprep.subr.bf16.mxu0 0
        %1399 = vmatpush1.bf16.msra.mxu0 0
        %1400 = vmatprep.subr.bf16.mxu0 0
        %1401 = vmatpush1.bf16.msra.mxu0 0
        %1402 = vmatprep.mubr.bf16.mxu0 0
        %1403 = vmatmul.mubr.bf16.gmra.mrb[0].mxu0 %v666
        %v1404 = vpop.f32.mrb[0].mxu0
        %v1405 = vadd.f32 %v1352, %v1404
        %v1406 = vpop.f32.mrb[0].mxu0
        %v1407 = vpop.f32.mrb[0].mxu0
        %v1408 = vadd.f32 %v1355, %v1407
        %v1409 = vpop.f32.mrb[0].mxu0
        %1410 = vdwg.mxu0
        %v1411 = vld [vmem:[%s10] sm:$0x1]
        %v1413 = vlaneseq
        %v1414 = vshrl.u32 %v1413, 7
        %v1415 = vsub.s32 0, %v1414
        %v1416 = vrot.slane %v1411, %v1415
        %v1418 = vadd.f32 %v1405, %v1416
        %v1419 = vadd.f32 %v1408, %v1416
        %v1420 = vmax.f32 %v1418, 0.0
        %v1421 = vmax.f32 %v1419, 0.0
        %v1422 = vpack.c.bf16 %v1421, %v1420
        %v1423 = vld [vmem:[%s11] sm:$0xf]
        %v1424 = vld [vmem:[%s11 + $0x4] sm:$0xf]
        %v1425 = vld [vmem:[%s11 + $0x8] sm:$0xf]
        %v1426 = vld [vmem:[%s11 + $0xc] sm:$0xf]
        %v1427 = vld [vmem:[%s11 + $0x10] sm:$0xf]
        %v1428 = vld [vmem:[%s11 + $0x14] sm:$0xf]
        %v1429 = vld [vmem:[%s11 + $0x18] sm:$0xf]
        %v1430 = vld [vmem:[%s11 + $0x1c] sm:$0xf]
        %v1431 = vld [vmem:[%s12] sm:$0x1]
        %v1433 = vlaneseq
        %v1434 = vshrl.u32 %v1433, 7
        %v1435 = vsub.s32 0, %v1434
        %v1436 = vrot.slane %v1431, %v1435
        %v1446 = vunpack.c.l.b16 %v1423
        %v1447 = vunpack.c.l.b16 %v1424
        %v1448 = vunpack.c.l.b16 %v1425
        %v1449 = vunpack.c.l.b16 %v1426
        %v1450 = vunpack.c.l.b16 %v1427
        %v1451 = vunpack.c.l.b16 %v1428
        %v1452 = vunpack.c.l.b16 %v1429
        %v1453 = vunpack.c.l.b16 %v1430
        %v1454 = vpack.c.b16 %v1447, %v1446
        %v1455 = vpack.c.b16 %v1449, %v1448
        %v1456 = vpack.c.b16 %v1451, %v1450
        %v1457 = vpack.c.b16 %v1453, %v1452
        %vm1462 = vcmask 523264
        %v1464 = vsel %vm1462, %v1422, 0
        %1466 = vmatprep.subr.bf16.mxu0 0
        %1467 = vmatpush1.bf16.msra.mxu0 %v1454
        %1468 = vmatprep.subr.bf16.mxu0 0
        %1469 = vmatpush1.bf16.msra.mxu0 %v1455
        %1470 = vmatprep.subr.bf16.mxu0 0
        %1471 = vmatpush1.bf16.msra.mxu0 %v1456
        %1472 = vmatprep.subr.bf16.mxu0 0
        %1473 = vmatpush1.bf16.msra.mxu0 %v1457
        %1474 = vmatprep.subr.bf16.mxu0 0
        %1475 = vmatpush1.bf16.msra.mxu0 0
        %1476 = vmatprep.subr.bf16.mxu0 0
        %1477 = vmatpush1.bf16.msra.mxu0 0
        %1478 = vmatprep.subr.bf16.mxu0 0
        %1479 = vmatpush1.bf16.msra.mxu0 0
        %1480 = vmatprep.subr.bf16.mxu0 0
        %1481 = vmatpush1.bf16.msra.mxu0 0
        %1482 = vmatprep.subr.bf16.mxu0 0
        %1483 = vmatpush1.bf16.msra.mxu0 0
        %1484 = vmatprep.subr.bf16.mxu0 0
        %1485 = vmatpush1.bf16.msra.mxu0 0
        %1486 = vmatprep.subr.bf16.mxu0 0
        %1487 = vmatpush1.bf16.msra.mxu0 0
        %1488 = vmatprep.subr.bf16.mxu0 0
        %1489 = vmatpush1.bf16.msra.mxu0 0
        %1490 = vmatprep.subr.bf16.mxu0 0
        %1491 = vmatpush1.bf16.msra.mxu0 0
        %1492 = vmatprep.subr.bf16.mxu0 0
        %1493 = vmatpush1.bf16.msra.mxu0 0
        %1494 = vmatprep.subr.bf16.mxu0 0
        %1495 = vmatpush1.bf16.msra.mxu0 0
        %1496 = vmatprep.subr.bf16.mxu0 0
        %1497 = vmatpush1.bf16.msra.mxu0 0
        %1498 = vmatprep.mubr.bf16.mxu0 0
        %1499 = vmatmul.mubr.bf16.gmra.mrb[0].mxu0 %v1464
        %v1500 = vpop.f32.mrb[0].mxu0
        %v1501 = vadd.f32 %v1436, %v1500
        %v1502 = vpop.f32.mrb[0].mxu0
        %v1503 = vpop.f32.mrb[0].mxu0
        %v1504 = vadd.f32 %v1436, %v1503
        %v1505 = vpop.f32.mrb[0].mxu0
        %1506 = vdwg.mxu0
        %1507 = vst.msk [vmem:[%s530] sm:$0xff] %vm664, %v1501
        %1508 = vst.msk [vmem:[%s530 + $0x8] sm:$0xff] %vm664, %v1504
        %s1509 = sand.u32 %s337, 1
        %s1510 = scalar_lea.sflag [#allocation6], %s1509
        %s1511 = sand.u32 %s337, 1
        %s1512 = smul.addr %s1511, 16
        %s1513 = scalar_lea.vmem [#allocation12], %s1512
        // Predicated region
        $region93: #{tpu_custom_call.1} parent=71 // pred_check
          %p1514 = pneg %p347
        $region94: #{tpu_custom_call.1} parent=71 // pred_check_branch
          %1516 = sbr.rel (%p1514) target = $region96
        $region95: #{tpu_custom_call.1} parent=71 // pred_region
          %s1517 = smul.u32 2, %s35
          %s1519 = ssub.s32 256, 256
          %1520 = vsyncadd %s1510, %s1519
          %s1521 = smul.addr %s34, 2
          %s1522 = sadd.s32 %s1517, %s1521
          %s1523 = smul.addr %s1522, 128
          %s1524 = scalar_lea.hbm %s13, %s1523
          %s1525 = sshll.u32 %s1513, 4
          %s1526 = int_to_ptr.vmem [resolvable:$true] %s1525
          %1531 = dma.vmem_to_hbm [thread:$0]  %s1526, 256, %s1524, %s1510, 128, 128, 8
        $region96: #{tpu_custom_call.1} parent=71 // pred_fallthru
          _
      $region72: #{tpu_custom_call.1} parent=5 // pred_fallthru
        _
      %p1532 = scmp.le.s32.totalorder 2, %s25
      // Predicated region
      $region97: #{tpu_custom_call.1} parent=5 // pred_check
        %p1533 = pneg %p1532
      $region98: #{tpu_custom_call.1} parent=5 // pred_check_branch
        %1535 = sbr.rel (%p1533) target = $region100
      $region99: #{tpu_custom_call.1} parent=5 // pred_region
        %s1536 = ssub.s32 %s25, 2
        // Predicated region
        $region101: #{tpu_custom_call.1} parent=99 // pred_check
          %p1537 = pneg %p353
        $region102: #{tpu_custom_call.1} parent=99 // pred_check_branch
          %1539 = sbr.rel (%p1537) target = $region104
        $region103: #{tpu_custom_call.1} parent=99 // pred_region
          %s1540 = sand.u32 %s338, 1
          %s1541 = scalar_lea.sflag [#allocation6], %s1540
          %s1542 = sand.u32 %s338, 1
          %s1543 = smul.addr %s1542, 16
          %s1544 = scalar_lea.vmem [#allocation12], %s1543
          %1545 = dma.done %s1541, 256
        $region104: #{tpu_custom_call.1} parent=99 // pred_fallthru
          _
      $region100: #{tpu_custom_call.1} parent=5 // pred_fallthru
        _
    $region6: #{tpu_custom_call.1} parent=1 // loop_footer
      %s29 = sadd.s32 1, %s25
    $region7: #{tpu_custom_call.1} parent=1 // loop_footer_branch
      %24 = sbr.rel target = $region3
    $region8: #{tpu_custom_call.1} parent=1 // loop_exit
      _
    %1546 = vsyncpa [#allocation5], 1
    %s1547 = scalar_lea.sflag [#allocation5], 1
    %1548 = vsyncpa %s1547, 1
    %1549 = vsyncpa [#allocation8], 1
    %1550 = vsyncpa [#allocation11], 1
    %1551 = vsyncpa [#allocation6], 1
    %s1552 = scalar_lea.sflag [#allocation6], 1
    %1553 = vsyncpa %s1552, 1

</llo_original>
